<compile_context>
chip_gen: v7x
topology: tpu7x:2x2x1
jax: 0.10.0
libtpu: 0.0.40
codegen_flags: <defaults>
</compile_context>

<pallas_src>
import jax
import jax.numpy as jnp
from jax.experimental import pallas as pl
from jax.experimental.pallas import tpu as pltpu

# ----------------------------------------------------------------------------
# Configuration (consistent with the module's constructor)
# ----------------------------------------------------------------------------
N            = 2      # batch (number of sentences)
MAX_SENT_LEN = 8      # max_sentence_len (T)
MAX_WORD_LEN = 16     # max_word_len
CHAR_VOCAB   = 32
WORD_VOCAB   = 64
E_CHAR       = 8
E_WORD       = 32
CNN_WINDOW   = 3      # cnn_window_size
CNN_FILTERS  = 16     # cnn_filter_num
CNN_PAD      = 1      # cnn_padding
HIDDEN       = 32     # bidirectional LSTM total hidden (16 per direction)
NUM_LAYERS   = 1
NUM_LABELS   = 8
DROPOUT_P    = 0.3    # identity at forward-reproduction time

# Derived constants
HD       = HIDDEN // 2                                   # 16 per direction
NP_BATCH = 8                                             # batch padded to one sublane group
M_TOKENS = NP_BATCH * MAX_SENT_LEN                       # 64 time-major tokens (row = t*NP + n)
T_OUT    = MAX_WORD_LEN + 2 * CNN_PAD - CNN_WINDOW + 1   # 16 conv output positions
CHAR_K   = MAX_WORD_LEN * E_CHAR                         # 128 (Toeplitz K)
CONV_N   = T_OUT * CNN_FILTERS                           # 256 (Toeplitz N)
D_IN     = CNN_FILTERS + E_WORD                          # 48  LSTM input features [char|word]
GATES    = 8 * HD                                        # 128 packed gate / label lanes
NEG_INF  = -1e30


# ----------------------------------------------------------------------------
# Fused Pallas kernel: whole NER forward -> scalar loss
# ----------------------------------------------------------------------------
def _ner_fused_kernel(xc_ref, tw_ref, w_ref, b_ref, aux_ref, y_ref, out_ref,
                      x_slab, h_slab):
    M, T, NP, Hd = M_TOKENS, MAX_SENT_LEN, NP_BATCH, HD

    # ---- Char-CNN: Toeplitz conv-as-matmul + log2 max-over-time tree + ReLU ---
    yc = jnp.dot(xc_ref[...], tw_ref[...],
                 preferred_element_type=jnp.float32)            # (M, 256) = 16 pos x 16 filt
    mcl = jnp.maximum(yc[:, 0:128], yc[:, 128:256])             # fold positions 16 -> 8
    mcl = jnp.maximum(mcl[:, 0:64], mcl[:, 64:128])             # 8 -> 4
    mcl = jnp.maximum(mcl[:, 0:32], mcl[:, 32:64])              # 4 -> 2
    mcl = jnp.maximum(mcl[:, 0:16], mcl[:, 16:32])              # 2 -> 1 : (M, F)
    # bias + ReLU commute with the per-filter max (both monotone, bias shared per pos)
    x_char = jnp.maximum(mcl + b_ref[0:1, 0:CNN_FILTERS], 0.0)  # (M, 16) f32

    # ---- Stage [char | word] slab, one fused input projection (both dirs) -----
    auxv = aux_ref[...]                                         # (M, 64): [word(32) | mask(32)]
    x_slab[:, 0:CNN_FILTERS] = x_char                           # module order: cat([char, word])
    x_slab[:, CNN_FILTERS:D_IN] = auxv[:, 0:E_WORD]

    wv    = w_ref[...]                                          # (112, 128) bf16 packed weights
    wih   = wv[0:D_IN, :]                                       # (48, 128)
    whh   = wv[D_IN:D_IN + HIDDEN, :]                           # (32, 128) block-diagonal
    projw = wv[D_IN + HIDDEN:D_IN + 2 * HIDDEN, :]              # (32, 128) label cols 0:8

    xproj = jnp.dot(x_slab[...].astype(jnp.bfloat16), wih,
                    preferred_element_type=jnp.float32) + b_ref[1:2, :]   # (M, 128)

    # gate lanes: [i_f i_b f_f f_b o_f o_b g_f g_b]; fwd lanes are the even 16-blocks
    lane = jax.lax.broadcasted_iota(jnp.int32, (NP, GATES), 1)
    fwd_lane = jnp.bitwise_and(lane, Hd) == 0

    h = jnp.zeros((NP, HIDDEN), jnp.float32)                    # [h_f | h_b]
    c = jnp.zeros((NP, HIDDEN), jnp.float32)                    # [c_f | c_b]

    for t in range(T):                                          # fused fwd+bwd recurrence
        tb = T - 1 - t
        gx = jnp.where(fwd_lane,
                       xproj[t * NP:(t + 1) * NP, :],           # fwd stream: time t
                       xproj[tb * NP:(tb + 1) * NP, :])         # bwd stream: time T-1-t
        gates = gx + jnp.dot(h.astype(jnp.bfloat16), whh,
                             preferred_element_type=jnp.float32)            # (NP, 128)
        sg = jax.nn.sigmoid(gates[:, 0:6 * Hd])                 # one wide sigmoid (i,f,o x 2dir)
        gg = jnp.tanh(gates[:, 6 * Hd:8 * Hd])                  # one tanh (g x 2dir)
        i_g = sg[:, 0:2 * Hd]
        f_g = sg[:, 2 * Hd:4 * Hd]
        o_g = sg[:, 4 * Hd:6 * Hd]
        c_new = f_g * c + i_g * gg
        h_new = o_g * jnp.tanh(c_new)

        mstep = auxv[t * NP:(t + 1) * NP, E_WORD:E_WORD + HIDDEN]   # [valid@t | valid@tb]
        c = c + mstep * (c_new - c)                             # padded steps carry state
        h = h + mstep * (h_new - h)
        h_out = mstep * h_new                                   # padded outputs -> 0
        h_slab[t * NP:(t + 1) * NP, 0:Hd] = h_out[:, 0:Hd]          # fwd half -> row group t
        h_slab[tb * NP:(tb + 1) * NP, Hd:HIDDEN] = h_out[:, Hd:HIDDEN]  # bwd half -> row group tb

    # ---- SoftmaxDecoder: lane-dense logits + masked-mean token CE --------------
    logits = jnp.dot(h_slab[...].astype(jnp.bfloat16), projw,
                     preferred_element_type=jnp.float32) + b_ref[2:3, :]   # (M, 128)
    mx = jnp.max(logits, axis=-1, keepdims=True)
    lse = mx + jnp.log(jnp.sum(jnp.exp(logits - mx), axis=-1, keepdims=True))
    cls = jax.lax.broadcasted_iota(jnp.int32, (M, GATES), 1)
    onehot = (cls == y_ref[...]).astype(jnp.float32)            # labels < NUM_LABELS < 128
    ll = jnp.sum(onehot * logits, axis=-1, keepdims=True)
    loss_mask = auxv[:, E_WORD:E_WORD + 1]                      # (M, 1) token validity
    tok = (lse - ll) * loss_mask
    loss_sum = jnp.sum(tok, axis=(0, 1), keepdims=True)         # (1, 1)
    count = jnp.sum(loss_mask, axis=(0, 1), keepdims=True)
    out_ref[...] = loss_sum / jnp.maximum(count, 1.0)           # masked-mean CE


# ----------------------------------------------------------------------------
# Wrapper glue: gathers, Toeplitz weight, gate packing, mask precompute
# ----------------------------------------------------------------------------
def _gate_chunks(w):
    """PyTorch LSTM gate chunk order along axis 0: (i, f, g, o), each HD wide."""
    return {"i": w[0:HD], "f": w[HD:2 * HD], "g": w[2 * HD:3 * HD], "o": w[3 * HD:4 * HD]}


def _pack_lstm(pf, pb):
    """Pack both directions into the lane-interleaved gate layout
    [i_f i_b f_f f_b o_f o_b g_f g_b] (16 lanes each)."""
    gf_ih, gb_ih = _gate_chunks(pf["w_ih"]), _gate_chunks(pb["w_ih"])
    gf_hh, gb_hh = _gate_chunks(pf["w_hh"]), _gate_chunks(pb["w_hh"])
    gf_b = _gate_chunks(pf["b_ih"] + pf["b_hh"])
    gb_b = _gate_chunks(pb["b_ih"] + pb["b_hh"])
    z = jnp.zeros((HD, HD), jnp.float32)
    wih_cols, whh_cols, b_parts = [], [], []
    for g in ("i", "f", "o", "g"):
        wih_cols += [gf_ih[g].T, gb_ih[g].T]
        whh_cols += [jnp.concatenate([gf_hh[g].T, z], axis=0),     # rows 0:16 = h_f features
                     jnp.concatenate([z, gb_hh[g].T], axis=0)]     # rows 16:32 = h_b features
        b_parts += [gf_b[g], gb_b[g]]
    return (jnp.concatenate(wih_cols, axis=1),      # (48, 128)
            jnp.concatenate(whh_cols, axis=1),      # (32, 128) block-diagonal
            jnp.concatenate(b_parts))               # (128,)


def _toeplitz_conv_weight(conv_w):
    """(F, E_CHAR, K) conv1d weight -> (MAX_WORD_LEN*E_CHAR, T_OUT*F) Toeplitz matrix
    so that x_flat @ TW gives every conv output position (zero padding folded in)."""
    tw = jnp.zeros((CHAR_K, CONV_N), jnp.float32)
    for k in range(CNN_WINDOW):
        sel = jnp.eye(MAX_WORD_LEN, T_OUT, k=CNN_PAD - k, dtype=jnp.float32)  # w == p + k - pad
        tw = tw + jnp.kron(sel, conv_w[:, :, k].T)
    return tw


def ner_forward(params, chars, words, lens, y):
    assert NUM_LAYERS == 1
    Nn, T, Wl = chars.shape
    pad = NP_BATCH - Nn
    M = M_TOKENS

    # Pad the batch to one full sublane group (padded sentences: len=0 -> masked out)
    chars_p = jnp.pad(chars, ((0, pad), (0, 0), (0, 0)))
    words_p = jnp.pad(words, ((0, pad), (0, 0)))
    y_p = jnp.pad(y, ((0, pad), (0, 0)))
    lens_p = jnp.pad(lens, ((0, pad),)).astype(jnp.int32)

    # Time-major rows: row = t * NP_BATCH + n
    chars_tm = jnp.transpose(chars_p, (1, 0, 2)).reshape(M, Wl)
    words_tm = jnp.transpose(words_p, (1, 0)).reshape(M)
    y_tm = jnp.transpose(y_p, (1, 0)).reshape(M, 1).astype(jnp.int32)

    # Char embedding gather -> flat (M, 128) bf16 slab (Toeplitz conv input)
    xc = jnp.take(params["char_emb"], chars_tm.reshape(-1), axis=0)
    xc = xc.reshape(M, CHAR_K).astype(jnp.bfloat16)
    tw = _toeplitz_conv_weight(params["conv_w"]).astype(jnp.bfloat16)        # (128, 256)

    # Word embedding gather (f32; cast to bf16 in-kernel at the MXU op)
    x_word = jnp.take(params["word_emb"], words_tm, axis=0).astype(jnp.float32)  # (M, 32)

    # Precomputed validity masks: row group t has [fwd valid @ t | bwd valid @ T-1-t]
    t_idx = jnp.arange(T)
    m_f = (lens_p[None, :] > t_idx[:, None]).astype(jnp.float32)             # (T, NP)
    m_b = (lens_p[None, :] > (T - 1 - t_idx)[:, None]).astype(jnp.float32)
    maskc = jnp.concatenate(
        [jnp.broadcast_to(m_f[:, :, None], (T, NP_BATCH, HD)),
         jnp.broadcast_to(m_b[:, :, None], (T, NP_BATCH, HD))],
        axis=-1).reshape(M, HIDDEN)
    aux = jnp.concatenate([x_word, maskc], axis=1)                           # (M, 64)

    # Packed LSTM weights / biases (interleaved gate lanes)
    wih_p, whh_p, gate_b = _pack_lstm(params["lstm"][0]["fwd"], params["lstm"][0]["bwd"])

    # Decoder projection padded to 128 label lanes; padded lanes get -1e30 bias
    projw_pad = jnp.zeros((HIDDEN, GATES), jnp.float32).at[:, 0:NUM_LABELS].set(
        params["proj_w"].T)
    projb_pad = jnp.full((GATES,), NEG_INF, jnp.float32).at[0:NUM_LABELS].set(
        params["proj_b"])

    # One weight slab and one bias slab
    w_slab = jnp.concatenate([wih_p, whh_p, projw_pad], axis=0).astype(jnp.bfloat16)  # (112,128)
    b_slab = jnp.zeros((8, GATES), jnp.float32)
    b_slab = b_slab.at[0, 0:CNN_FILTERS].set(params["conv_b"])
    b_slab = b_slab.at[1, :].set(gate_b)
    b_slab = b_slab.at[2, :].set(projb_pad)

    loss = pl.pallas_call(
        _ner_fused_kernel,
        out_shape=jax.ShapeDtypeStruct((1, 1), jnp.float32),
        scratch_shapes=[pltpu.VMEM((M, D_IN), jnp.float32),     # [char | word] staging slab
                        pltpu.VMEM((M, HIDDEN), jnp.float32)],  # per-step [h_f | h_b] outputs
        compiler_params=pltpu.CompilerParams(vmem_limit_bytes=16 * 1024 * 1024),
    )(xc, tw, w_slab, b_slab, aux, y_tm)
    return loss[0, 0]


# ----------------------------------------------------------------------------
# Deterministic parameter init (synthetic, matches module __init__ shapes)
# ----------------------------------------------------------------------------
def init_params(key):
    Hd = HIDDEN // 2
    in_size = E_WORD + CNN_FILTERS
    ks = jax.random.split(key, 7)

    def rnd(k, shape, scale=0.1):
        return scale * jax.random.normal(k, shape, dtype=jnp.float32)

    keys_lstm = jax.random.split(ks[5], NUM_LAYERS * 8)
    lstm_layers = []
    for l in range(NUM_LAYERS):
        d_in = in_size if l == 0 else HIDDEN
        layer = {}
        for di, direction in enumerate(("fwd", "bwd")):
            base = l * 8 + di * 4
            layer[direction] = {
                "w_ih": rnd(keys_lstm[base + 0], (4 * Hd, d_in)),
                "w_hh": rnd(keys_lstm[base + 1], (4 * Hd, Hd)),
                "b_ih": rnd(keys_lstm[base + 2], (4 * Hd,)),
                "b_hh": rnd(keys_lstm[base + 3], (4 * Hd,)),
            }
        lstm_layers.append(layer)

    return {
        "char_emb": rnd(ks[0], (CHAR_VOCAB, E_CHAR), 1.0),
        "conv_w": rnd(ks[1], (CNN_FILTERS, E_CHAR, CNN_WINDOW)),
        "conv_b": rnd(ks[2], (CNN_FILTERS,)),
        "word_emb": rnd(ks[3], (WORD_VOCAB, E_WORD), 1.0),
        "proj_w": rnd(ks[4], (NUM_LABELS, HIDDEN)),
        "proj_b": rnd(ks[6], (NUM_LABELS,)),
        "lstm": lstm_layers,
    }


if __name__ == "__main__":
    key = jax.random.PRNGKey(0)
    kp, kc, kw, ky = jax.random.split(key, 4)

    params = init_params(kp)
    chars = jax.random.randint(
        kc, (N, MAX_SENT_LEN, MAX_WORD_LEN), 0, CHAR_VOCAB, dtype=jnp.int32
    )
    words = jax.random.randint(kw, (N, MAX_SENT_LEN), 0, WORD_VOCAB, dtype=jnp.int32)
    lens = jnp.array([MAX_SENT_LEN, 5], dtype=jnp.int32)
    y = jax.random.randint(ky, (N, MAX_SENT_LEN), 0, NUM_LABELS, dtype=jnp.int32)

    loss = jax.jit(ner_forward)(params, chars, words, lens, y)
    jax.block_until_ready(loss)
    assert loss.shape == () and jnp.isfinite(loss)
    print("KERNEL_OK")
</pallas_src>

<mosaic_0001>
module attributes {stable_mosaic.version = 11 : i64} {
  func.func @_ner_fused_kernel(%arg0: memref<64x128xbf16, #tpu.memory_space<vmem>>, %arg1: memref<128x256xbf16, #tpu.memory_space<vmem>>, %arg2: memref<112x128xbf16, #tpu.memory_space<vmem>>, %arg3: memref<8x128xf32, #tpu.memory_space<vmem>>, %arg4: memref<64x64xf32, #tpu.memory_space<vmem>>, %arg5: memref<64x1xi32, #tpu.memory_space<vmem>>, %arg6: memref<1x1xf32, #tpu.memory_space<vmem>>, %arg7: memref<64x48xf32, #tpu.memory_space<vmem>>, %arg8: memref<64x32xf32, #tpu.memory_space<vmem>>) attributes {dimension_semantics = [], scalar_prefetch = 0 : i64, scratch_operands = 2 : i64, tpu.core_type = #tpu.core_type<tc>} {
    %c0 = arith.constant 0 : index
    %c0_0 = arith.constant 0 : index
    %0 = vector.load %arg0[%c0, %c0_0] : memref<64x128xbf16, #tpu.memory_space<vmem>>, vector<64x128xbf16>
    %c0_1 = arith.constant 0 : index
    %c0_2 = arith.constant 0 : index
    %1 = vector.load %arg1[%c0_1, %c0_2] : memref<128x256xbf16, #tpu.memory_space<vmem>>, vector<128x256xbf16>
    %cst = arith.constant dense<0.000000e+00> : vector<64x256xf32>
    %2 = tpu.matmul %0, %1, %cst {dimension_numbers = #tpu.dot_dimension_numbers<[1], [0], [0], [1], [0, 0, 1, 1], [], []>} : vector<64x128xbf16>, vector<128x256xbf16>, vector<64x256xf32> -> vector<64x256xf32>
    %3 = vector.extract_strided_slice %2 {offsets = [0, 0], sizes = [64, 128], strides = [1, 1]} : vector<64x256xf32> to vector<64x128xf32>
    %4 = vector.extract_strided_slice %2 {offsets = [0, 128], sizes = [64, 128], strides = [1, 1]} : vector<64x256xf32> to vector<64x128xf32>
    %5 = arith.maximumf %3, %4 : vector<64x128xf32>
    %6 = vector.extract_strided_slice %5 {offsets = [0, 0], sizes = [64, 64], strides = [1, 1]} : vector<64x128xf32> to vector<64x64xf32>
    %7 = vector.extract_strided_slice %5 {offsets = [0, 64], sizes = [64, 64], strides = [1, 1]} : vector<64x128xf32> to vector<64x64xf32>
    %8 = arith.maximumf %6, %7 : vector<64x64xf32>
    %9 = vector.extract_strided_slice %8 {offsets = [0, 0], sizes = [64, 32], strides = [1, 1]} : vector<64x64xf32> to vector<64x32xf32>
    %10 = vector.extract_strided_slice %8 {offsets = [0, 32], sizes = [64, 32], strides = [1, 1]} : vector<64x64xf32> to vector<64x32xf32>
    %11 = arith.maximumf %9, %10 : vector<64x32xf32>
    %12 = vector.extract_strided_slice %11 {offsets = [0, 0], sizes = [64, 16], strides = [1, 1]} : vector<64x32xf32> to vector<64x16xf32>
    %13 = vector.extract_strided_slice %11 {offsets = [0, 16], sizes = [64, 16], strides = [1, 1]} : vector<64x32xf32> to vector<64x16xf32>
    %14 = arith.maximumf %12, %13 : vector<64x16xf32>
    %c0_3 = arith.constant 0 : index
    %c0_4 = arith.constant 0 : index
    %15 = vector.load %arg3[%c0_3, %c0_4] : memref<8x128xf32, #tpu.memory_space<vmem>>, vector<1x16xf32>
    %16 = vector.broadcast %15 : vector<1x16xf32> to vector<64x16xf32>
    %17 = arith.addf %14, %16 : vector<64x16xf32>
    %cst_5 = arith.constant 0.000000e+00 : f32
    %18 = vector.broadcast %cst_5 : f32 to vector<64x16xf32>
    %19 = arith.maximumf %17, %18 : vector<64x16xf32>
    %c0_6 = arith.constant 0 : index
    %c0_7 = arith.constant 0 : index
    %20 = vector.load %arg4[%c0_6, %c0_7] : memref<64x64xf32, #tpu.memory_space<vmem>>, vector<64x64xf32>
    %c0_8 = arith.constant 0 : index
    %c0_9 = arith.constant 0 : index
    %21 = vector.load %arg7[%c0_8, %c0_9] : memref<64x48xf32, #tpu.memory_space<vmem>>, vector<64x16xf32>
    tpu.vector_store %arg7[%c0_8, %c0_9], %19 {strides = array<i32>} : memref<64x48xf32, #tpu.memory_space<vmem>>, vector<64x16xf32>,
    %22 = vector.extract_strided_slice %20 {offsets = [0, 0], sizes = [64, 32], strides = [1, 1]} : vector<64x64xf32> to vector<64x32xf32>
    %c0_10 = arith.constant 0 : index
    %c16 = arith.constant 16 : index
    %23 = vector.load %arg7[%c0_10, %c16] : memref<64x48xf32, #tpu.memory_space<vmem>>, vector<64x32xf32>
    tpu.vector_store %arg7[%c0_10, %c16], %22 {strides = array<i32>} : memref<64x48xf32, #tpu.memory_space<vmem>>, vector<64x32xf32>,
    %c0_11 = arith.constant 0 : index
    %c0_12 = arith.constant 0 : index
    %24 = vector.load %arg2[%c0_11, %c0_12] : memref<112x128xbf16, #tpu.memory_space<vmem>>, vector<112x128xbf16>
    %25 = vector.extract_strided_slice %24 {offsets = [0, 0], sizes = [48, 128], strides = [1, 1]} : vector<112x128xbf16> to vector<48x128xbf16>
    %26 = vector.extract_strided_slice %24 {offsets = [48, 0], sizes = [32, 128], strides = [1, 1]} : vector<112x128xbf16> to vector<32x128xbf16>
    %27 = vector.extract_strided_slice %24 {offsets = [80, 0], sizes = [32, 128], strides = [1, 1]} : vector<112x128xbf16> to vector<32x128xbf16>
    %c0_13 = arith.constant 0 : index
    %c0_14 = arith.constant 0 : index
    %28 = vector.load %arg7[%c0_13, %c0_14] : memref<64x48xf32, #tpu.memory_space<vmem>>, vector<64x48xf32>
    %29 = arith.truncf %28 : vector<64x48xf32> to vector<64x48xbf16>
    %cst_15 = arith.constant dense<0.000000e+00> : vector<64x128xf32>
    %30 = tpu.matmul %29, %25, %cst_15 {dimension_numbers = #tpu.dot_dimension_numbers<[1], [0], [0], [1], [0, 0, 1, 1], [], []>} : vector<64x48xbf16>, vector<48x128xbf16>, vector<64x128xf32> -> vector<64x128xf32>
    %c1 = arith.constant 1 : index
    %c0_16 = arith.constant 0 : index
    %31 = vector.load %arg3[%c1, %c0_16] : memref<8x128xf32, #tpu.memory_space<vmem>>, vector<1x128xf32>
    %32 = vector.broadcast %31 : vector<1x128xf32> to vector<64x128xf32>
    %33 = arith.addf %30, %32 : vector<64x128xf32>
    %34 = tpu.iota {dimensions = array<i32: 1>} : vector<8x128xi32>
    %c16_i32 = arith.constant 16 : i32
    %35 = vector.broadcast %c16_i32 : i32 to vector<8x128xi32>
    %36 = arith.andi %34, %35 : vector<8x128xi32>
    %c0_i32 = arith.constant 0 : i32
    %37 = vector.broadcast %c0_i32 : i32 to vector<8x128xi32>
    %38 = arith.cmpi eq, %36, %37 : vector<8x128xi32>
    %cst_17 = arith.constant 0.000000e+00 : f32
    %39 = vector.broadcast %cst_17 : f32 to vector<8x32xf32>
    %cst_18 = arith.constant 0.000000e+00 : f32
    %40 = vector.broadcast %cst_18 : f32 to vector<8x32xf32>
    %41 = vector.extract_strided_slice %33 {offsets = [0, 0], sizes = [8, 128], strides = [1, 1]} : vector<64x128xf32> to vector<8x128xf32>
    %42 = vector.extract_strided_slice %33 {offsets = [56, 0], sizes = [8, 128], strides = [1, 1]} : vector<64x128xf32> to vector<8x128xf32>
    %43 = arith.select %38, %41, %42 : vector<8x128xi1>, vector<8x128xf32>
    %44 = arith.truncf %39 : vector<8x32xf32> to vector<8x32xbf16>
    %cst_19 = arith.constant dense<0.000000e+00> : vector<8x128xf32>
    %45 = tpu.matmul %44, %26, %cst_19 {dimension_numbers = #tpu.dot_dimension_numbers<[1], [0], [0], [1], [0, 0, 1, 1], [], []>} : vector<8x32xbf16>, vector<32x128xbf16>, vector<8x128xf32> -> vector<8x128xf32>
    %46 = arith.addf %43, %45 : vector<8x128xf32>
    %47 = vector.extract_strided_slice %46 {offsets = [0, 0], sizes = [8, 96], strides = [1, 1]} : vector<8x128xf32> to vector<8x96xf32>
    %48 = arith.negf %47 : vector<8x96xf32>
    %49 = math.exp %48 : vector<8x96xf32>
    %cst_20 = arith.constant 1.000000e+00 : f32
    %50 = vector.broadcast %cst_20 : f32 to vector<8x96xf32>
    %51 = arith.addf %50, %49 : vector<8x96xf32>
    %52 = arith.divf %50, %51 : vector<8x96xf32>
    %53 = vector.extract_strided_slice %46 {offsets = [0, 96], sizes = [8, 32], strides = [1, 1]} : vector<8x128xf32> to vector<8x32xf32>
    %54 = math.tanh %53 : vector<8x32xf32>
    %55 = vector.extract_strided_slice %52 {offsets = [0, 0], sizes = [8, 32], strides = [1, 1]} : vector<8x96xf32> to vector<8x32xf32>
    %56 = vector.extract_strided_slice %52 {offsets = [0, 32], sizes = [8, 32], strides = [1, 1]} : vector<8x96xf32> to vector<8x32xf32>
    %57 = vector.extract_strided_slice %52 {offsets = [0, 64], sizes = [8, 32], strides = [1, 1]} : vector<8x96xf32> to vector<8x32xf32>
    %58 = arith.mulf %56, %40 : vector<8x32xf32>
    %59 = arith.mulf %55, %54 : vector<8x32xf32>
    %60 = arith.addf %58, %59 : vector<8x32xf32>
    %61 = math.tanh %60 : vector<8x32xf32>
    %62 = arith.mulf %57, %61 : vector<8x32xf32>
    %63 = vector.extract_strided_slice %20 {offsets = [0, 32], sizes = [8, 32], strides = [1, 1]} : vector<64x64xf32> to vector<8x32xf32>
    %64 = arith.subf %60, %40 : vector<8x32xf32>
    %65 = arith.mulf %63, %64 : vector<8x32xf32>
    %66 = arith.addf %40, %65 : vector<8x32xf32>
    %67 = arith.subf %62, %39 : vector<8x32xf32>
    %68 = arith.mulf %63, %67 : vector<8x32xf32>
    %69 = arith.addf %39, %68 : vector<8x32xf32>
    %70 = arith.mulf %63, %62 : vector<8x32xf32>
    %71 = vector.extract_strided_slice %70 {offsets = [0, 0], sizes = [8, 16], strides = [1, 1]} : vector<8x32xf32> to vector<8x16xf32>
    %c0_21 = arith.constant 0 : index
    %c0_22 = arith.constant 0 : index
    %72 = vector.load %arg8[%c0_21, %c0_22] : memref<64x32xf32, #tpu.memory_space<vmem>>, vector<8x16xf32>
    tpu.vector_store %arg8[%c0_21, %c0_22], %71 {strides = array<i32>} : memref<64x32xf32, #tpu.memory_space<vmem>>, vector<8x16xf32>,
    %73 = vector.extract_strided_slice %70 {offsets = [0, 16], sizes = [8, 16], strides = [1, 1]} : vector<8x32xf32> to vector<8x16xf32>
    %c56 = arith.constant 56 : index
    %c16_23 = arith.constant 16 : index
    %74 = vector.load %arg8[%c56, %c16_23] : memref<64x32xf32, #tpu.memory_space<vmem>>, vector<8x16xf32>
    tpu.vector_store %arg8[%c56, %c16_23], %73 {strides = array<i32>} : memref<64x32xf32, #tpu.memory_space<vmem>>, vector<8x16xf32>,
    %75 = vector.extract_strided_slice %33 {offsets = [8, 0], sizes = [8, 128], strides = [1, 1]} : vector<64x128xf32> to vector<8x128xf32>
    %76 = vector.extract_strided_slice %33 {offsets = [48, 0], sizes = [8, 128], strides = [1, 1]} : vector<64x128xf32> to vector<8x128xf32>
    %77 = arith.select %38, %75, %76 : vector<8x128xi1>, vector<8x128xf32>
    %78 = arith.truncf %69 : vector<8x32xf32> to vector<8x32xbf16>
    %cst_24 = arith.constant dense<0.000000e+00> : vector<8x128xf32>
    %79 = tpu.matmul %78, %26, %cst_24 {dimension_numbers = #tpu.dot_dimension_numbers<[1], [0], [0], [1], [0, 0, 1, 1], [], []>} : vector<8x32xbf16>, vector<32x128xbf16>, vector<8x128xf32> -> vector<8x128xf32>
    %80 = arith.addf %77, %79 : vector<8x128xf32>
    %81 = vector.extract_strided_slice %80 {offsets = [0, 0], sizes = [8, 96], strides = [1, 1]} : vector<8x128xf32> to vector<8x96xf32>
    %82 = arith.negf %81 : vector<8x96xf32>
    %83 = math.exp %82 : vector<8x96xf32>
    %cst_25 = arith.constant 1.000000e+00 : f32
    %84 = vector.broadcast %cst_25 : f32 to vector<8x96xf32>
    %85 = arith.addf %84, %83 : vector<8x96xf32>
    %86 = arith.divf %84, %85 : vector<8x96xf32>
    %87 = vector.extract_strided_slice %80 {offsets = [0, 96], sizes = [8, 32], strides = [1, 1]} : vector<8x128xf32> to vector<8x32xf32>
    %88 = math.tanh %87 : vector<8x32xf32>
    %89 = vector.extract_strided_slice %86 {offsets = [0, 0], sizes = [8, 32], strides = [1, 1]} : vector<8x96xf32> to vector<8x32xf32>
    %90 = vector.extract_strided_slice %86 {offsets = [0, 32], sizes = [8, 32], strides = [1, 1]} : vector<8x96xf32> to vector<8x32xf32>
    %91 = vector.extract_strided_slice %86 {offsets = [0, 64], sizes = [8, 32], strides = [1, 1]} : vector<8x96xf32> to vector<8x32xf32>
    %92 = arith.mulf %90, %66 : vector<8x32xf32>
    %93 = arith.mulf %89, %88 : vector<8x32xf32>
    %94 = arith.addf %92, %93 : vector<8x32xf32>
    %95 = math.tanh %94 : vector<8x32xf32>
    %96 = arith.mulf %91, %95 : vector<8x32xf32>
    %97 = vector.extract_strided_slice %20 {offsets = [8, 32], sizes = [8, 32], strides = [1, 1]} : vector<64x64xf32> to vector<8x32xf32>
    %98 = arith.subf %94, %66 : vector<8x32xf32>
    %99 = arith.mulf %97, %98 : vector<8x32xf32>
    %100 = arith.addf %66, %99 : vector<8x32xf32>
    %101 = arith.subf %96, %69 : vector<8x32xf32>
    %102 = arith.mulf %97, %101 : vector<8x32xf32>
    %103 = arith.addf %69, %102 : vector<8x32xf32>
    %104 = arith.mulf %97, %96 : vector<8x32xf32>
    %105 = vector.extract_strided_slice %104 {offsets = [0, 0], sizes = [8, 16], strides = [1, 1]} : vector<8x32xf32> to vector<8x16xf32>
    %c8 = arith.constant 8 : index
    %c0_26 = arith.constant 0 : index
    %106 = vector.load %arg8[%c8, %c0_26] : memref<64x32xf32, #tpu.memory_space<vmem>>, vector<8x16xf32>
    tpu.vector_store %arg8[%c8, %c0_26], %105 {strides = array<i32>} : memref<64x32xf32, #tpu.memory_space<vmem>>, vector<8x16xf32>,
    %107 = vector.extract_strided_slice %104 {offsets = [0, 16], sizes = [8, 16], strides = [1, 1]} : vector<8x32xf32> to vector<8x16xf32>
    %c48 = arith.constant 48 : index
    %c16_27 = arith.constant 16 : index
    %108 = vector.load %arg8[%c48, %c16_27] : memref<64x32xf32, #tpu.memory_space<vmem>>, vector<8x16xf32>
    tpu.vector_store %arg8[%c48, %c16_27], %107 {strides = array<i32>} : memref<64x32xf32, #tpu.memory_space<vmem>>, vector<8x16xf32>,
    %109 = vector.extract_strided_slice %33 {offsets = [16, 0], sizes = [8, 128], strides = [1, 1]} : vector<64x128xf32> to vector<8x128xf32>
    %110 = vector.extract_strided_slice %33 {offsets = [40, 0], sizes = [8, 128], strides = [1, 1]} : vector<64x128xf32> to vector<8x128xf32>
    %111 = arith.select %38, %109, %110 : vector<8x128xi1>, vector<8x128xf32>
    %112 = arith.truncf %103 : vector<8x32xf32> to vector<8x32xbf16>
    %cst_28 = arith.constant dense<0.000000e+00> : vector<8x128xf32>
    %113 = tpu.matmul %112, %26, %cst_28 {dimension_numbers = #tpu.dot_dimension_numbers<[1], [0], [0], [1], [0, 0, 1, 1], [], []>} : vector<8x32xbf16>, vector<32x128xbf16>, vector<8x128xf32> -> vector<8x128xf32>
    %114 = arith.addf %111, %113 : vector<8x128xf32>
    %115 = vector.extract_strided_slice %114 {offsets = [0, 0], sizes = [8, 96], strides = [1, 1]} : vector<8x128xf32> to vector<8x96xf32>
    %116 = arith.negf %115 : vector<8x96xf32>
    %117 = math.exp %116 : vector<8x96xf32>
    %cst_29 = arith.constant 1.000000e+00 : f32
    %118 = vector.broadcast %cst_29 : f32 to vector<8x96xf32>
    %119 = arith.addf %118, %117 : vector<8x96xf32>
    %120 = arith.divf %118, %119 : vector<8x96xf32>
    %121 = vector.extract_strided_slice %114 {offsets = [0, 96], sizes = [8, 32], strides = [1, 1]} : vector<8x128xf32> to vector<8x32xf32>
    %122 = math.tanh %121 : vector<8x32xf32>
    %123 = vector.extract_strided_slice %120 {offsets = [0, 0], sizes = [8, 32], strides = [1, 1]} : vector<8x96xf32> to vector<8x32xf32>
    %124 = vector.extract_strided_slice %120 {offsets = [0, 32], sizes = [8, 32], strides = [1, 1]} : vector<8x96xf32> to vector<8x32xf32>
    %125 = vector.extract_strided_slice %120 {offsets = [0, 64], sizes = [8, 32], strides = [1, 1]} : vector<8x96xf32> to vector<8x32xf32>
    %126 = arith.mulf %124, %100 : vector<8x32xf32>
    %127 = arith.mulf %123, %122 : vector<8x32xf32>
    %128 = arith.addf %126, %127 : vector<8x32xf32>
    %129 = math.tanh %128 : vector<8x32xf32>
    %130 = arith.mulf %125, %129 : vector<8x32xf32>
    %131 = vector.extract_strided_slice %20 {offsets = [16, 32], sizes = [8, 32], strides = [1, 1]} : vector<64x64xf32> to vector<8x32xf32>
    %132 = arith.subf %128, %100 : vector<8x32xf32>
    %133 = arith.mulf %131, %132 : vector<8x32xf32>
    %134 = arith.addf %100, %133 : vector<8x32xf32>
    %135 = arith.subf %130, %103 : vector<8x32xf32>
    %136 = arith.mulf %131, %135 : vector<8x32xf32>
    %137 = arith.addf %103, %136 : vector<8x32xf32>
    %138 = arith.mulf %131, %130 : vector<8x32xf32>
    %139 = vector.extract_strided_slice %138 {offsets = [0, 0], sizes = [8, 16], strides = [1, 1]} : vector<8x32xf32> to vector<8x16xf32>
    %c16_30 = arith.constant 16 : index
    %c0_31 = arith.constant 0 : index
    %140 = vector.load %arg8[%c16_30, %c0_31] : memref<64x32xf32, #tpu.memory_space<vmem>>, vector<8x16xf32>
    tpu.vector_store %arg8[%c16_30, %c0_31], %139 {strides = array<i32>} : memref<64x32xf32, #tpu.memory_space<vmem>>, vector<8x16xf32>,
    %141 = vector.extract_strided_slice %138 {offsets = [0, 16], sizes = [8, 16], strides = [1, 1]} : vector<8x32xf32> to vector<8x16xf32>
    %c40 = arith.constant 40 : index
    %c16_32 = arith.constant 16 : index
    %142 = vector.load %arg8[%c40, %c16_32] : memref<64x32xf32, #tpu.memory_space<vmem>>, vector<8x16xf32>
    tpu.vector_store %arg8[%c40, %c16_32], %141 {strides = array<i32>} : memref<64x32xf32, #tpu.memory_space<vmem>>, vector<8x16xf32>,
    %143 = vector.extract_strided_slice %33 {offsets = [24, 0], sizes = [8, 128], strides = [1, 1]} : vector<64x128xf32> to vector<8x128xf32>
    %144 = vector.extract_strided_slice %33 {offsets = [32, 0], sizes = [8, 128], strides = [1, 1]} : vector<64x128xf32> to vector<8x128xf32>
    %145 = arith.select %38, %143, %144 : vector<8x128xi1>, vector<8x128xf32>
    %146 = arith.truncf %137 : vector<8x32xf32> to vector<8x32xbf16>
    %cst_33 = arith.constant dense<0.000000e+00> : vector<8x128xf32>
    %147 = tpu.matmul %146, %26, %cst_33 {dimension_numbers = #tpu.dot_dimension_numbers<[1], [0], [0], [1], [0, 0, 1, 1], [], []>} : vector<8x32xbf16>, vector<32x128xbf16>, vector<8x128xf32> -> vector<8x128xf32>
    %148 = arith.addf %145, %147 : vector<8x128xf32>
    %149 = vector.extract_strided_slice %148 {offsets = [0, 0], sizes = [8, 96], strides = [1, 1]} : vector<8x128xf32> to vector<8x96xf32>
    %150 = arith.negf %149 : vector<8x96xf32>
    %151 = math.exp %150 : vector<8x96xf32>
    %cst_34 = arith.constant 1.000000e+00 : f32
    %152 = vector.broadcast %cst_34 : f32 to vector<8x96xf32>
    %153 = arith.addf %152, %151 : vector<8x96xf32>
    %154 = arith.divf %152, %153 : vector<8x96xf32>
    %155 = vector.extract_strided_slice %148 {offsets = [0, 96], sizes = [8, 32], strides = [1, 1]} : vector<8x128xf32> to vector<8x32xf32>
    %156 = math.tanh %155 : vector<8x32xf32>
    %157 = vector.extract_strided_slice %154 {offsets = [0, 0], sizes = [8, 32], strides = [1, 1]} : vector<8x96xf32> to vector<8x32xf32>
    %158 = vector.extract_strided_slice %154 {offsets = [0, 32], sizes = [8, 32], strides = [1, 1]} : vector<8x96xf32> to vector<8x32xf32>
    %159 = vector.extract_strided_slice %154 {offsets = [0, 64], sizes = [8, 32], strides = [1, 1]} : vector<8x96xf32> to vector<8x32xf32>
    %160 = arith.mulf %158, %134 : vector<8x32xf32>
    %161 = arith.mulf %157, %156 : vector<8x32xf32>
    %162 = arith.addf %160, %161 : vector<8x32xf32>
    %163 = math.tanh %162 : vector<8x32xf32>
    %164 = arith.mulf %159, %163 : vector<8x32xf32>
    %165 = vector.extract_strided_slice %20 {offsets = [24, 32], sizes = [8, 32], strides = [1, 1]} : vector<64x64xf32> to vector<8x32xf32>
    %166 = arith.subf %162, %134 : vector<8x32xf32>
    %167 = arith.mulf %165, %166 : vector<8x32xf32>
    %168 = arith.addf %134, %167 : vector<8x32xf32>
    %169 = arith.subf %164, %137 : vector<8x32xf32>
    %170 = arith.mulf %165, %169 : vector<8x32xf32>
    %171 = arith.addf %137, %170 : vector<8x32xf32>
    %172 = arith.mulf %165, %164 : vector<8x32xf32>
    %173 = vector.extract_strided_slice %172 {offsets = [0, 0], sizes = [8, 16], strides = [1, 1]} : vector<8x32xf32> to vector<8x16xf32>
    %c24 = arith.constant 24 : index
    %c0_35 = arith.constant 0 : index
    %174 = vector.load %arg8[%c24, %c0_35] : memref<64x32xf32, #tpu.memory_space<vmem>>, vector<8x16xf32>
    tpu.vector_store %arg8[%c24, %c0_35], %173 {strides = array<i32>} : memref<64x32xf32, #tpu.memory_space<vmem>>, vector<8x16xf32>,
    %175 = vector.extract_strided_slice %172 {offsets = [0, 16], sizes = [8, 16], strides = [1, 1]} : vector<8x32xf32> to vector<8x16xf32>
    %c32 = arith.constant 32 : index
    %c16_36 = arith.constant 16 : index
    %176 = vector.load %arg8[%c32, %c16_36] : memref<64x32xf32, #tpu.memory_space<vmem>>, vector<8x16xf32>
    tpu.vector_store %arg8[%c32, %c16_36], %175 {strides = array<i32>} : memref<64x32xf32, #tpu.memory_space<vmem>>, vector<8x16xf32>,
    %177 = vector.extract_strided_slice %33 {offsets = [32, 0], sizes = [8, 128], strides = [1, 1]} : vector<64x128xf32> to vector<8x128xf32>
    %178 = vector.extract_strided_slice %33 {offsets = [24, 0], sizes = [8, 128], strides = [1, 1]} : vector<64x128xf32> to vector<8x128xf32>
    %179 = arith.select %38, %177, %178 : vector<8x128xi1>, vector<8x128xf32>
    %180 = arith.truncf %171 : vector<8x32xf32> to vector<8x32xbf16>
    %cst_37 = arith.constant dense<0.000000e+00> : vector<8x128xf32>
    %181 = tpu.matmul %180, %26, %cst_37 {dimension_numbers = #tpu.dot_dimension_numbers<[1], [0], [0], [1], [0, 0, 1, 1], [], []>} : vector<8x32xbf16>, vector<32x128xbf16>, vector<8x128xf32> -> vector<8x128xf32>
    %182 = arith.addf %179, %181 : vector<8x128xf32>
    %183 = vector.extract_strided_slice %182 {offsets = [0, 0], sizes = [8, 96], strides = [1, 1]} : vector<8x128xf32> to vector<8x96xf32>
    %184 = arith.negf %183 : vector<8x96xf32>
    %185 = math.exp %184 : vector<8x96xf32>
    %cst_38 = arith.constant 1.000000e+00 : f32
    %186 = vector.broadcast %cst_38 : f32 to vector<8x96xf32>
    %187 = arith.addf %186, %185 : vector<8x96xf32>
    %188 = arith.divf %186, %187 : vector<8x96xf32>
    %189 = vector.extract_strided_slice %182 {offsets = [0, 96], sizes = [8, 32], strides = [1, 1]} : vector<8x128xf32> to vector<8x32xf32>
    %190 = math.tanh %189 : vector<8x32xf32>
    %191 = vector.extract_strided_slice %188 {offsets = [0, 0], sizes = [8, 32], strides = [1, 1]} : vector<8x96xf32> to vector<8x32xf32>
    %192 = vector.extract_strided_slice %188 {offsets = [0, 32], sizes = [8, 32], strides = [1, 1]} : vector<8x96xf32> to vector<8x32xf32>
    %193 = vector.extract_strided_slice %188 {offsets = [0, 64], sizes = [8, 32], strides = [1, 1]} : vector<8x96xf32> to vector<8x32xf32>
    %194 = arith.mulf %192, %168 : vector<8x32xf32>
    %195 = arith.mulf %191, %190 : vector<8x32xf32>
    %196 = arith.addf %194, %195 : vector<8x32xf32>
    %197 = math.tanh %196 : vector<8x32xf32>
    %198 = arith.mulf %193, %197 : vector<8x32xf32>
    %199 = vector.extract_strided_slice %20 {offsets = [32, 32], sizes = [8, 32], strides = [1, 1]} : vector<64x64xf32> to vector<8x32xf32>
    %200 = arith.subf %196, %168 : vector<8x32xf32>
    %201 = arith.mulf %199, %200 : vector<8x32xf32>
    %202 = arith.addf %168, %201 : vector<8x32xf32>
    %203 = arith.subf %198, %171 : vector<8x32xf32>
    %204 = arith.mulf %199, %203 : vector<8x32xf32>
    %205 = arith.addf %171, %204 : vector<8x32xf32>
    %206 = arith.mulf %199, %198 : vector<8x32xf32>
    %207 = vector.extract_strided_slice %206 {offsets = [0, 0], sizes = [8, 16], strides = [1, 1]} : vector<8x32xf32> to vector<8x16xf32>
    %c32_39 = arith.constant 32 : index
    %c0_40 = arith.constant 0 : index
    %208 = vector.load %arg8[%c32_39, %c0_40] : memref<64x32xf32, #tpu.memory_space<vmem>>, vector<8x16xf32>
    tpu.vector_store %arg8[%c32_39, %c0_40], %207 {strides = array<i32>} : memref<64x32xf32, #tpu.memory_space<vmem>>, vector<8x16xf32>,
    %209 = vector.extract_strided_slice %206 {offsets = [0, 16], sizes = [8, 16], strides = [1, 1]} : vector<8x32xf32> to vector<8x16xf32>
    %c24_41 = arith.constant 24 : index
    %c16_42 = arith.constant 16 : index
    %210 = vector.load %arg8[%c24_41, %c16_42] : memref<64x32xf32, #tpu.memory_space<vmem>>, vector<8x16xf32>
    tpu.vector_store %arg8[%c24_41, %c16_42], %209 {strides = array<i32>} : memref<64x32xf32, #tpu.memory_space<vmem>>, vector<8x16xf32>,
    %211 = vector.extract_strided_slice %33 {offsets = [40, 0], sizes = [8, 128], strides = [1, 1]} : vector<64x128xf32> to vector<8x128xf32>
    %212 = vector.extract_strided_slice %33 {offsets = [16, 0], sizes = [8, 128], strides = [1, 1]} : vector<64x128xf32> to vector<8x128xf32>
    %213 = arith.select %38, %211, %212 : vector<8x128xi1>, vector<8x128xf32>
    %214 = arith.truncf %205 : vector<8x32xf32> to vector<8x32xbf16>
    %cst_43 = arith.constant dense<0.000000e+00> : vector<8x128xf32>
    %215 = tpu.matmul %214, %26, %cst_43 {dimension_numbers = #tpu.dot_dimension_numbers<[1], [0], [0], [1], [0, 0, 1, 1], [], []>} : vector<8x32xbf16>, vector<32x128xbf16>, vector<8x128xf32> -> vector<8x128xf32>
    %216 = arith.addf %213, %215 : vector<8x128xf32>
    %217 = vector.extract_strided_slice %216 {offsets = [0, 0], sizes = [8, 96], strides = [1, 1]} : vector<8x128xf32> to vector<8x96xf32>
    %218 = arith.negf %217 : vector<8x96xf32>
    %219 = math.exp %218 : vector<8x96xf32>
    %cst_44 = arith.constant 1.000000e+00 : f32
    %220 = vector.broadcast %cst_44 : f32 to vector<8x96xf32>
    %221 = arith.addf %220, %219 : vector<8x96xf32>
    %222 = arith.divf %220, %221 : vector<8x96xf32>
    %223 = vector.extract_strided_slice %216 {offsets = [0, 96], sizes = [8, 32], strides = [1, 1]} : vector<8x128xf32> to vector<8x32xf32>
    %224 = math.tanh %223 : vector<8x32xf32>
    %225 = vector.extract_strided_slice %222 {offsets = [0, 0], sizes = [8, 32], strides = [1, 1]} : vector<8x96xf32> to vector<8x32xf32>
    %226 = vector.extract_strided_slice %222 {offsets = [0, 32], sizes = [8, 32], strides = [1, 1]} : vector<8x96xf32> to vector<8x32xf32>
    %227 = vector.extract_strided_slice %222 {offsets = [0, 64], sizes = [8, 32], strides = [1, 1]} : vector<8x96xf32> to vector<8x32xf32>
    %228 = arith.mulf %226, %202 : vector<8x32xf32>
    %229 = arith.mulf %225, %224 : vector<8x32xf32>
    %230 = arith.addf %228, %229 : vector<8x32xf32>
    %231 = math.tanh %230 : vector<8x32xf32>
    %232 = arith.mulf %227, %231 : vector<8x32xf32>
    %233 = vector.extract_strided_slice %20 {offsets = [40, 32], sizes = [8, 32], strides = [1, 1]} : vector<64x64xf32> to vector<8x32xf32>
    %234 = arith.subf %230, %202 : vector<8x32xf32>
    %235 = arith.mulf %233, %234 : vector<8x32xf32>
    %236 = arith.addf %202, %235 : vector<8x32xf32>
    %237 = arith.subf %232, %205 : vector<8x32xf32>
    %238 = arith.mulf %233, %237 : vector<8x32xf32>
    %239 = arith.addf %205, %238 : vector<8x32xf32>
    %240 = arith.mulf %233, %232 : vector<8x32xf32>
    %241 = vector.extract_strided_slice %240 {offsets = [0, 0], sizes = [8, 16], strides = [1, 1]} : vector<8x32xf32> to vector<8x16xf32>
    %c40_45 = arith.constant 40 : index
    %c0_46 = arith.constant 0 : index
    %242 = vector.load %arg8[%c40_45, %c0_46] : memref<64x32xf32, #tpu.memory_space<vmem>>, vector<8x16xf32>
    tpu.vector_store %arg8[%c40_45, %c0_46], %241 {strides = array<i32>} : memref<64x32xf32, #tpu.memory_space<vmem>>, vector<8x16xf32>,
    %243 = vector.extract_strided_slice %240 {offsets = [0, 16], sizes = [8, 16], strides = [1, 1]} : vector<8x32xf32> to vector<8x16xf32>
    %c16_47 = arith.constant 16 : index
    %c16_48 = arith.constant 16 : index
    %244 = vector.load %arg8[%c16_47, %c16_48] : memref<64x32xf32, #tpu.memory_space<vmem>>, vector<8x16xf32>
    tpu.vector_store %arg8[%c16_47, %c16_48], %243 {strides = array<i32>} : memref<64x32xf32, #tpu.memory_space<vmem>>, vector<8x16xf32>,
    %245 = vector.extract_strided_slice %33 {offsets = [48, 0], sizes = [8, 128], strides = [1, 1]} : vector<64x128xf32> to vector<8x128xf32>
    %246 = vector.extract_strided_slice %33 {offsets = [8, 0], sizes = [8, 128], strides = [1, 1]} : vector<64x128xf32> to vector<8x128xf32>
    %247 = arith.select %38, %245, %246 : vector<8x128xi1>, vector<8x128xf32>
    %248 = arith.truncf %239 : vector<8x32xf32> to vector<8x32xbf16>
    %cst_49 = arith.constant dense<0.000000e+00> : vector<8x128xf32>
    %249 = tpu.matmul %248, %26, %cst_49 {dimension_numbers = #tpu.dot_dimension_numbers<[1], [0], [0], [1], [0, 0, 1, 1], [], []>} : vector<8x32xbf16>, vector<32x128xbf16>, vector<8x128xf32> -> vector<8x128xf32>
    %250 = arith.addf %247, %249 : vector<8x128xf32>
    %251 = vector.extract_strided_slice %250 {offsets = [0, 0], sizes = [8, 96], strides = [1, 1]} : vector<8x128xf32> to vector<8x96xf32>
    %252 = arith.negf %251 : vector<8x96xf32>
    %253 = math.exp %252 : vector<8x96xf32>
    %cst_50 = arith.constant 1.000000e+00 : f32
    %254 = vector.broadcast %cst_50 : f32 to vector<8x96xf32>
    %255 = arith.addf %254, %253 : vector<8x96xf32>
    %256 = arith.divf %254, %255 : vector<8x96xf32>
    %257 = vector.extract_strided_slice %250 {offsets = [0, 96], sizes = [8, 32], strides = [1, 1]} : vector<8x128xf32> to vector<8x32xf32>
    %258 = math.tanh %257 : vector<8x32xf32>
    %259 = vector.extract_strided_slice %256 {offsets = [0, 0], sizes = [8, 32], strides = [1, 1]} : vector<8x96xf32> to vector<8x32xf32>
    %260 = vector.extract_strided_slice %256 {offsets = [0, 32], sizes = [8, 32], strides = [1, 1]} : vector<8x96xf32> to vector<8x32xf32>
    %261 = vector.extract_strided_slice %256 {offsets = [0, 64], sizes = [8, 32], strides = [1, 1]} : vector<8x96xf32> to vector<8x32xf32>
    %262 = arith.mulf %260, %236 : vector<8x32xf32>
    %263 = arith.mulf %259, %258 : vector<8x32xf32>
    %264 = arith.addf %262, %263 : vector<8x32xf32>
    %265 = math.tanh %264 : vector<8x32xf32>
    %266 = arith.mulf %261, %265 : vector<8x32xf32>
    %267 = vector.extract_strided_slice %20 {offsets = [48, 32], sizes = [8, 32], strides = [1, 1]} : vector<64x64xf32> to vector<8x32xf32>
    %268 = arith.subf %264, %236 : vector<8x32xf32>
    %269 = arith.mulf %267, %268 : vector<8x32xf32>
    %270 = arith.addf %236, %269 : vector<8x32xf32>
    %271 = arith.subf %266, %239 : vector<8x32xf32>
    %272 = arith.mulf %267, %271 : vector<8x32xf32>
    %273 = arith.addf %239, %272 : vector<8x32xf32>
    %274 = arith.mulf %267, %266 : vector<8x32xf32>
    %275 = vector.extract_strided_slice %274 {offsets = [0, 0], sizes = [8, 16], strides = [1, 1]} : vector<8x32xf32> to vector<8x16xf32>
    %c48_51 = arith.constant 48 : index
    %c0_52 = arith.constant 0 : index
    %276 = vector.load %arg8[%c48_51, %c0_52] : memref<64x32xf32, #tpu.memory_space<vmem>>, vector<8x16xf32>
    tpu.vector_store %arg8[%c48_51, %c0_52], %275 {strides = array<i32>} : memref<64x32xf32, #tpu.memory_space<vmem>>, vector<8x16xf32>,
    %277 = vector.extract_strided_slice %274 {offsets = [0, 16], sizes = [8, 16], strides = [1, 1]} : vector<8x32xf32> to vector<8x16xf32>
    %c8_53 = arith.constant 8 : index
    %c16_54 = arith.constant 16 : index
    %278 = vector.load %arg8[%c8_53, %c16_54] : memref<64x32xf32, #tpu.memory_space<vmem>>, vector<8x16xf32>
    tpu.vector_store %arg8[%c8_53, %c16_54], %277 {strides = array<i32>} : memref<64x32xf32, #tpu.memory_space<vmem>>, vector<8x16xf32>,
    %279 = vector.extract_strided_slice %33 {offsets = [56, 0], sizes = [8, 128], strides = [1, 1]} : vector<64x128xf32> to vector<8x128xf32>
    %280 = vector.extract_strided_slice %33 {offsets = [0, 0], sizes = [8, 128], strides = [1, 1]} : vector<64x128xf32> to vector<8x128xf32>
    %281 = arith.select %38, %279, %280 : vector<8x128xi1>, vector<8x128xf32>
    %282 = arith.truncf %273 : vector<8x32xf32> to vector<8x32xbf16>
    %cst_55 = arith.constant dense<0.000000e+00> : vector<8x128xf32>
    %283 = tpu.matmul %282, %26, %cst_55 {dimension_numbers = #tpu.dot_dimension_numbers<[1], [0], [0], [1], [0, 0, 1, 1], [], []>} : vector<8x32xbf16>, vector<32x128xbf16>, vector<8x128xf32> -> vector<8x128xf32>
    %284 = arith.addf %281, %283 : vector<8x128xf32>
    %285 = vector.extract_strided_slice %284 {offsets = [0, 0], sizes = [8, 96], strides = [1, 1]} : vector<8x128xf32> to vector<8x96xf32>
    %286 = arith.negf %285 : vector<8x96xf32>
    %287 = math.exp %286 : vector<8x96xf32>
    %cst_56 = arith.constant 1.000000e+00 : f32
    %288 = vector.broadcast %cst_56 : f32 to vector<8x96xf32>
    %289 = arith.addf %288, %287 : vector<8x96xf32>
    %290 = arith.divf %288, %289 : vector<8x96xf32>
    %291 = vector.extract_strided_slice %284 {offsets = [0, 96], sizes = [8, 32], strides = [1, 1]} : vector<8x128xf32> to vector<8x32xf32>
    %292 = math.tanh %291 : vector<8x32xf32>
    %293 = vector.extract_strided_slice %290 {offsets = [0, 0], sizes = [8, 32], strides = [1, 1]} : vector<8x96xf32> to vector<8x32xf32>
    %294 = vector.extract_strided_slice %290 {offsets = [0, 32], sizes = [8, 32], strides = [1, 1]} : vector<8x96xf32> to vector<8x32xf32>
    %295 = vector.extract_strided_slice %290 {offsets = [0, 64], sizes = [8, 32], strides = [1, 1]} : vector<8x96xf32> to vector<8x32xf32>
    %296 = arith.mulf %294, %270 : vector<8x32xf32>
    %297 = arith.mulf %293, %292 : vector<8x32xf32>
    %298 = arith.addf %296, %297 : vector<8x32xf32>
    %299 = math.tanh %298 : vector<8x32xf32>
    %300 = arith.mulf %295, %299 : vector<8x32xf32>
    %301 = vector.extract_strided_slice %20 {offsets = [56, 32], sizes = [8, 32], strides = [1, 1]} : vector<64x64xf32> to vector<8x32xf32>
    %302 = arith.mulf %301, %300 : vector<8x32xf32>
    %303 = vector.extract_strided_slice %302 {offsets = [0, 0], sizes = [8, 16], strides = [1, 1]} : vector<8x32xf32> to vector<8x16xf32>
    %c56_57 = arith.constant 56 : index
    %c0_58 = arith.constant 0 : index
    %304 = vector.load %arg8[%c56_57, %c0_58] : memref<64x32xf32, #tpu.memory_space<vmem>>, vector<8x16xf32>
    tpu.vector_store %arg8[%c56_57, %c0_58], %303 {strides = array<i32>} : memref<64x32xf32, #tpu.memory_space<vmem>>, vector<8x16xf32>,
    %305 = vector.extract_strided_slice %302 {offsets = [0, 16], sizes = [8, 16], strides = [1, 1]} : vector<8x32xf32> to vector<8x16xf32>
    %c0_59 = arith.constant 0 : index
    %c16_60 = arith.constant 16 : index
    %306 = vector.load %arg8[%c0_59, %c16_60] : memref<64x32xf32, #tpu.memory_space<vmem>>, vector<8x16xf32>
    tpu.vector_store %arg8[%c0_59, %c16_60], %305 {strides = array<i32>} : memref<64x32xf32, #tpu.memory_space<vmem>>, vector<8x16xf32>,
    %c0_61 = arith.constant 0 : index
    %c0_62 = arith.constant 0 : index
    %307 = vector.load %arg8[%c0_61, %c0_62] : memref<64x32xf32, #tpu.memory_space<vmem>>, vector<64x32xf32>
    %308 = arith.truncf %307 : vector<64x32xf32> to vector<64x32xbf16>
    %cst_63 = arith.constant dense<0.000000e+00> : vector<64x128xf32>
    %309 = tpu.matmul %308, %27, %cst_63 {dimension_numbers = #tpu.dot_dimension_numbers<[1], [0], [0], [1], [0, 0, 1, 1], [], []>} : vector<64x32xbf16>, vector<32x128xbf16>, vector<64x128xf32> -> vector<64x128xf32>
    %c2 = arith.constant 2 : index
    %c0_64 = arith.constant 0 : index
    %310 = vector.load %arg3[%c2, %c0_64] : memref<8x128xf32, #tpu.memory_space<vmem>>, vector<1x128xf32>
    %311 = vector.broadcast %310 : vector<1x128xf32> to vector<64x128xf32>
    %312 = arith.addf %309, %311 : vector<64x128xf32>
    %cst_65 = arith.constant dense<0xFF800000> : vector<64xf32>
    %313 = vector.multi_reduction <maximumf>, %312, %cst_65 [1] : vector<64x128xf32> to vector<64xf32>
    %314 = vector.shape_cast %313 : vector<64xf32> to vector<64x1xf32>
    %315 = vector.broadcast %314 : vector<64x1xf32> to vector<64x128xf32>
    %316 = arith.subf %312, %315 : vector<64x128xf32>
    %317 = math.exp %316 : vector<64x128xf32>
    %cst_66 = arith.constant dense<0.000000e+00> : vector<64xf32>
    %318 = vector.multi_reduction <add>, %317, %cst_66 [1] : vector<64x128xf32> to vector<64xf32>
    %319 = vector.shape_cast %318 : vector<64xf32> to vector<64x1xf32>
    %320 = math.log %319 : vector<64x1xf32>
    %321 = arith.addf %314, %320 : vector<64x1xf32>
    %322 = tpu.iota {dimensions = array<i32: 1>} : vector<64x128xi32>
    %c0_67 = arith.constant 0 : index
    %c0_68 = arith.constant 0 : index
    %323 = vector.load %arg5[%c0_67, %c0_68] : memref<64x1xi32, #tpu.memory_space<vmem>>, vector<64x1xi32>
    %324 = vector.broadcast %323 : vector<64x1xi32> to vector<64x128xi32>
    %325 = arith.cmpi eq, %322, %324 : vector<64x128xi32>
    %326 = arith.extui %325 : vector<64x128xi1> to vector<64x128xi32>
    %327 = arith.sitofp %326 : vector<64x128xi32> to vector<64x128xf32>
    %328 = arith.mulf %327, %312 : vector<64x128xf32>
    %cst_69 = arith.constant dense<0.000000e+00> : vector<64xf32>
    %329 = vector.multi_reduction <add>, %328, %cst_69 [1] : vector<64x128xf32> to vector<64xf32>
    %330 = vector.shape_cast %329 : vector<64xf32> to vector<64x1xf32>
    %331 = vector.extract_strided_slice %20 {offsets = [0, 32], sizes = [64, 1], strides = [1, 1]} : vector<64x64xf32> to vector<64x1xf32>
    %332 = arith.subf %321, %330 : vector<64x1xf32>
    %333 = arith.mulf %332, %331 : vector<64x1xf32>
    %334 = vector.shape_cast %333 : vector<64x1xf32> to vector<1x64x1xf32>
    %cst_70 = arith.constant dense<0.000000e+00> : vector<1xf32>
    %335 = vector.multi_reduction <add>, %334, %cst_70 [1, 2] : vector<1x64x1xf32> to vector<1xf32>
    %336 = vector.shape_cast %335 : vector<1xf32> to vector<1x1x1xf32>
    %337 = vector.extract %336[0, 0, 0] : f32 from vector<1x1x1xf32>
    %338 = vector.broadcast %337 : f32 to vector<1x1xf32>
    %339 = vector.shape_cast %331 : vector<64x1xf32> to vector<1x64x1xf32>
    %cst_71 = arith.constant dense<0.000000e+00> : vector<1xf32>
    %340 = vector.multi_reduction <add>, %339, %cst_71 [1, 2] : vector<1x64x1xf32> to vector<1xf32>
    %341 = vector.shape_cast %340 : vector<1xf32> to vector<1x1x1xf32>
    %342 = vector.extract %341[0, 0, 0] : f32 from vector<1x1x1xf32>
    %343 = vector.broadcast %342 : f32 to vector<1x1xf32>
    %cst_72 = arith.constant 1.000000e+00 : f32
    %344 = vector.broadcast %cst_72 : f32 to vector<1x1xf32>
    %345 = arith.maximumf %343, %344 : vector<1x1xf32>
    %346 = arith.divf %338, %345 : vector<1x1xf32>
    %c0_73 = arith.constant 0 : index
    %c0_74 = arith.constant 0 : index
    %347 = vector.load %arg6[%c0_73, %c0_74] : memref<1x1xf32, #tpu.memory_space<vmem>>, vector<1x1xf32>
    tpu.vector_store %arg6[%c0_73, %c0_74], %346 {strides = array<i32>} : memref<1x1xf32, #tpu.memory_space<vmem>>, vector<1x1xf32>,
    return
  }
}

</mosaic_0001>

<llo_original>
// kernel: ner_forward.1
$region0: #{ner_forward.1}
  #allocation0 [shape = 'u32[]', space=smem, size = 0x4, offset = 0x4, fixed_abs, tag = 'smem constant byte address 0x4 - core index']
  #allocation1 [shape = 'u32[144,128]{1,0:T(1,128)}', space=vmem, size = 0x12000, scoped, tag = 'internal scratch']
  #allocation2 [shape = 'f32[64,48]{1,0:T(8,128)}', space=vmem, size = 0x8000, scoped, tag = 'scratch operand']
  #allocation3 [shape = 'f32[64,32]{1,0:T(8,128)}', space=vmem, size = 0x8000, scoped, tag = 'scratch operand']
  %s0 = inlined_call_operand.vmem [shape: bf16[64,128], index: 0, kind: input, shape index: {}]
  %s1 = inlined_call_operand.vmem [shape: bf16[128,256], index: 1, kind: input, shape index: {}]
  %s2 = inlined_call_operand.vmem [shape: bf16[112,128], index: 2, kind: input, shape index: {}]
  %s3 = inlined_call_operand.vmem [shape: f32[8,128], index: 3, kind: input, shape index: {}]
  %s4 = inlined_call_operand.vmem [shape: f32[64,64], index: 4, kind: input, shape index: {}]
  %s5 = inlined_call_operand.vmem [shape: s32[64,1], index: 5, kind: input, shape index: {}]
  %s6 = inlined_call_operand.hbm [shape: f32[1,1], index: 6, kind: output, shape index: {}]
  %s7 = sld [smem:[#allocation0]]
  $region34: #{ner_forward.1} parent=0
    _
  %s9 = ssub.s32 1, %s7
  %s10 = scalar_select 0, %s9, %s7
  $region1: #{ner_forward.1} parent=0
    #allocation4 [shape = 'u8[512]{0}', space=vmem, size = 0x400, scoped, tag = 'output window, operand 0, single buffered']
    #allocation5 [shape = 's32[1]{0}', space=sflag, size = 0x4, scoped, tag = 'scoped memory for ner_forward.1']
    %11 = vsyncpa [#allocation5], 0
    // Predicated region
    $region2: #{ner_forward.1} parent=1 // pred_check
      _
    $region3: #{ner_forward.1} parent=1 // pred_check_branch
      %13 = sbr.rel (0) target = $region5
    $region4: #{ner_forward.1} parent=1 // pred_region
      _
    $region5: #{ner_forward.1} parent=1 // pred_fallthru
      _
    // Predicated region
    $region6: #{ner_forward.1} parent=1 // pred_check
      _
    $region7: #{ner_forward.1} parent=1 // pred_check_branch
      %15 = sbr.rel (0) target = $region9
    $region8: #{ner_forward.1} parent=1 // pred_region
      _
    $region9: #{ner_forward.1} parent=1 // pred_fallthru
      _
    // Predicated region
    $region10: #{ner_forward.1} parent=1 // pred_check
      _
    $region11: #{ner_forward.1} parent=1 // pred_check_branch
      %17 = sbr.rel (0) target = $region13
    $region12: #{ner_forward.1} parent=1 // pred_region
      _
    $region13: #{ner_forward.1} parent=1 // pred_fallthru
      _
    // Predicated region
    $region14: #{ner_forward.1} parent=1 // pred_check
      _
    $region15: #{ner_forward.1} parent=1 // pred_check_branch
      %19 = sbr.rel (0) target = $region17
    $region16: #{ner_forward.1} parent=1 // pred_region
      _
    $region17: #{ner_forward.1} parent=1 // pred_fallthru
      _
    // Predicated region
    $region18: #{ner_forward.1} parent=1 // pred_check
      _
    $region19: #{ner_forward.1} parent=1 // pred_check_branch
      %21 = sbr.rel (0) target = $region21
    $region20: #{ner_forward.1} parent=1 // pred_region
      _
    $region21: #{ner_forward.1} parent=1 // pred_fallthru
      _
    // Predicated region
    $region22: #{ner_forward.1} parent=1 // pred_check
      _
    $region23: #{ner_forward.1} parent=1 // pred_check_branch
      %23 = sbr.rel (0) target = $region25
    $region24: #{ner_forward.1} parent=1 // pred_region
      _
    $region25: #{ner_forward.1} parent=1 // pred_fallthru
      _
    %v25 = vld [vmem:[%s0] sm:$0xf]
    %v26 = vld [vmem:[%s0 + $0x4] sm:$0xf]
    %v27 = vld [vmem:[%s0 + $0x8] sm:$0xf]
    %v28 = vld [vmem:[%s0 + $0xc] sm:$0xf]
    %v29 = vld [vmem:[%s0 + $0x10] sm:$0xf]
    %v30 = vld [vmem:[%s0 + $0x14] sm:$0xf]
    %v31 = vld [vmem:[%s0 + $0x18] sm:$0xf]
    %v32 = vld [vmem:[%s0 + $0x1c] sm:$0xf]
    %v33 = vld [vmem:[%s1] sm:$0xff]
    %v34 = vld [vmem:[%s1 + $0x8] sm:$0xff]
    %v35 = vld [vmem:[%s1 + $0x10] sm:$0xff]
    %v36 = vld [vmem:[%s1 + $0x18] sm:$0xff]
    %v37 = vld [vmem:[%s1 + $0x20] sm:$0xff]
    %v38 = vld [vmem:[%s1 + $0x28] sm:$0xff]
    %v39 = vld [vmem:[%s1 + $0x30] sm:$0xff]
    %v40 = vld [vmem:[%s1 + $0x38] sm:$0xff]
    %v41 = vld [vmem:[%s1 + $0x40] sm:$0xff]
    %v42 = vld [vmem:[%s1 + $0x48] sm:$0xff]
    %v43 = vld [vmem:[%s1 + $0x50] sm:$0xff]
    %v44 = vld [vmem:[%s1 + $0x58] sm:$0xff]
    %v45 = vld [vmem:[%s1 + $0x60] sm:$0xff]
    %v46 = vld [vmem:[%s1 + $0x68] sm:$0xff]
    %v47 = vld [vmem:[%s1 + $0x70] sm:$0xff]
    %v48 = vld [vmem:[%s1 + $0x78] sm:$0xff]
    %v57 = vunpack.c.l.b16 %v25
    %v58 = vunpack.c.l.b16 %v26
    %v59 = vunpack.c.l.b16 %v27
    %v60 = vunpack.c.l.b16 %v28
    %v61 = vunpack.c.l.b16 %v29
    %v62 = vunpack.c.l.b16 %v30
    %v63 = vunpack.c.l.b16 %v31
    %v64 = vunpack.c.l.b16 %v32
    %v65 = vpack.c.b16 %v58, %v57
    %v66 = vpack.c.b16 %v60, %v59
    %v67 = vpack.c.b16 %v62, %v61
    %v68 = vpack.c.b16 %v64, %v63
    %v89 = vunpack.c.l.b16 %v33
    %v90 = vunpack.c.h.b16 %v33
    %v91 = vunpack.c.l.b16 %v34
    %v92 = vunpack.c.h.b16 %v34
    %v93 = vunpack.c.l.b16 %v35
    %v94 = vunpack.c.h.b16 %v35
    %v95 = vunpack.c.l.b16 %v36
    %v96 = vunpack.c.h.b16 %v36
    %v97 = vunpack.c.l.b16 %v37
    %v98 = vunpack.c.h.b16 %v37
    %v99 = vunpack.c.l.b16 %v38
    %v100 = vunpack.c.h.b16 %v38
    %v101 = vunpack.c.l.b16 %v39
    %v102 = vunpack.c.h.b16 %v39
    %v103 = vunpack.c.l.b16 %v40
    %v104 = vunpack.c.h.b16 %v40
    %v105 = vunpack.c.l.b16 %v41
    %v106 = vunpack.c.h.b16 %v41
    %v107 = vunpack.c.l.b16 %v42
    %v108 = vunpack.c.h.b16 %v42
    %v109 = vunpack.c.l.b16 %v43
    %v110 = vunpack.c.h.b16 %v43
    %v111 = vunpack.c.l.b16 %v44
    %v112 = vunpack.c.h.b16 %v44
    %v113 = vunpack.c.l.b16 %v45
    %v114 = vunpack.c.h.b16 %v45
    %v115 = vunpack.c.l.b16 %v46
    %v116 = vunpack.c.h.b16 %v46
    %v117 = vunpack.c.l.b16 %v47
    %v118 = vunpack.c.h.b16 %v47
    %v119 = vunpack.c.l.b16 %v48
    %v120 = vunpack.c.h.b16 %v48
    %v121 = vpack.c.b16 %v91, %v89
    %v122 = vpack.c.b16 %v92, %v90
    %v123 = vpack.c.b16 %v95, %v93
    %v124 = vpack.c.b16 %v96, %v94
    %v125 = vpack.c.b16 %v99, %v97
    %v126 = vpack.c.b16 %v100, %v98
    %v127 = vpack.c.b16 %v103, %v101
    %v128 = vpack.c.b16 %v104, %v102
    %v129 = vpack.c.b16 %v107, %v105
    %v130 = vpack.c.b16 %v108, %v106
    %v131 = vpack.c.b16 %v111, %v109
    %v132 = vpack.c.b16 %v112, %v110
    %v133 = vpack.c.b16 %v115, %v113
    %v134 = vpack.c.b16 %v116, %v114
    %v135 = vpack.c.b16 %v119, %v117
    %v136 = vpack.c.b16 %v120, %v118
    %153 = vmatprep.subr.bf16.mxu0 %v122
    %154 = vmatpush1.bf16.msra.mxu0 %v121
    %155 = vmatprep.subr.bf16.mxu0 %v124
    %156 = vmatpush1.bf16.msra.mxu0 %v123
    %157 = vmatprep.subr.bf16.mxu0 %v126
    %158 = vmatpush1.bf16.msra.mxu0 %v125
    %159 = vmatprep.subr.bf16.mxu0 %v128
    %160 = vmatpush1.bf16.msra.mxu0 %v127
    %161 = vmatprep.subr.bf16.mxu0 %v130
    %162 = vmatpush1.bf16.msra.mxu0 %v129
    %163 = vmatprep.subr.bf16.mxu0 %v132
    %164 = vmatpush1.bf16.msra.mxu0 %v131
    %165 = vmatprep.subr.bf16.mxu0 %v134
    %166 = vmatpush1.bf16.msra.mxu0 %v133
    %167 = vmatprep.subr.bf16.mxu0 %v136
    %168 = vmatpush1.bf16.msra.mxu0 %v135
    %169 = vmatprep.subr.bf16.mxu0 0
    %170 = vmatpush1.bf16.msra.mxu0 0
    %171 = vmatprep.subr.bf16.mxu0 0
    %172 = vmatpush1.bf16.msra.mxu0 0
    %173 = vmatprep.subr.bf16.mxu0 0
    %174 = vmatpush1.bf16.msra.mxu0 0
    %175 = vmatprep.subr.bf16.mxu0 0
    %176 = vmatpush1.bf16.msra.mxu0 0
    %177 = vmatprep.subr.bf16.mxu0 0
    %178 = vmatpush1.bf16.msra.mxu0 0
    %179 = vmatprep.subr.bf16.mxu0 0
    %180 = vmatpush1.bf16.msra.mxu0 0
    %181 = vmatprep.subr.bf16.mxu0 0
    %182 = vmatpush1.bf16.msra.mxu0 0
    %183 = vmatprep.subr.bf16.mxu0 0
    %184 = vmatpush1.bf16.msra.mxu0 0
    %185 = vmatprep.mubr.bf16.mxu0 0
    %186 = vmatmul.mubr.bf16.gmra.mrb[0].mxu0 %v65
    %v187 = vpop.f32.mrb[0].mxu0
    %v188 = vadd.f32 0.0, %v187
    %v189 = vpop.f32.mrb[0].mxu0
    %v190 = vadd.f32 0.0, %v189
    %v191 = vpop.f32.mrb[0].mxu0
    %v192 = vadd.f32 0.0, %v191
    %v193 = vpop.f32.mrb[0].mxu0
    %v194 = vadd.f32 0.0, %v193
    %195 = vmatprep.mubr.bf16.mxu0 0
    %196 = vmatmul.mubr.bf16.gmra.mrb[0].mxu0 %v66
    %v197 = vpop.f32.mrb[0].mxu0
    %v198 = vadd.f32 0.0, %v197
    %v199 = vpop.f32.mrb[0].mxu0
    %v200 = vadd.f32 0.0, %v199
    %v201 = vpop.f32.mrb[0].mxu0
    %v202 = vadd.f32 0.0, %v201
    %v203 = vpop.f32.mrb[0].mxu0
    %v204 = vadd.f32 0.0, %v203
    %205 = vmatprep.mubr.bf16.mxu0 0
    %206 = vmatmul.mubr.bf16.gmra.mrb[0].mxu0 %v67
    %v207 = vpop.f32.mrb[0].mxu0
    %v208 = vadd.f32 0.0, %v207
    %v209 = vpop.f32.mrb[0].mxu0
    %v210 = vadd.f32 0.0, %v209
    %v211 = vpop.f32.mrb[0].mxu0
    %v212 = vadd.f32 0.0, %v211
    %v213 = vpop.f32.mrb[0].mxu0
    %v214 = vadd.f32 0.0, %v213
    %215 = vmatprep.mubr.bf16.mxu0 0
    %216 = vmatmul.mubr.bf16.gmra.mrb[0].mxu0 %v68
    %v217 = vpop.f32.mrb[0].mxu0
    %v218 = vadd.f32 0.0, %v217
    %v219 = vpop.f32.mrb[0].mxu0
    %v220 = vadd.f32 0.0, %v219
    %v221 = vpop.f32.mrb[0].mxu0
    %v222 = vadd.f32 0.0, %v221
    %v223 = vpop.f32.mrb[0].mxu0
    %v224 = vadd.f32 0.0, %v223
    %225 = vdwg.mxu0
    %v226 = vmax.f32 %v188, %v190
    %v227 = vmax.f32 %v192, %v194
    %v228 = vmax.f32 %v198, %v200
    %v229 = vmax.f32 %v202, %v204
    %v230 = vmax.f32 %v208, %v210
    %v231 = vmax.f32 %v212, %v214
    %v232 = vmax.f32 %v218, %v220
    %v233 = vmax.f32 %v222, %v224
    %242 = vrot.lane.b32.xlu0 %v226, 64
    %v243 = vpop.permute.xlu0 %242
    %244 = vrot.lane.b32.xlu0 %v227, 64
    %v245 = vpop.permute.xlu0 %244
    %246 = vrot.lane.b32.xlu0 %v228, 64
    %v247 = vpop.permute.xlu0 %246
    %248 = vrot.lane.b32.xlu0 %v229, 64
    %v249 = vpop.permute.xlu0 %248
    %250 = vrot.lane.b32.xlu0 %v230, 64
    %v251 = vpop.permute.xlu0 %250
    %252 = vrot.lane.b32.xlu0 %v231, 64
    %v253 = vpop.permute.xlu0 %252
    %254 = vrot.lane.b32.xlu0 %v232, 64
    %v255 = vpop.permute.xlu0 %254
    %256 = vrot.lane.b32.xlu0 %v233, 64
    %v257 = vpop.permute.xlu0 %256
    %v266 = vmax.f32 %v226, %v243
    %v267 = vmax.f32 %v227, %v245
    %v268 = vmax.f32 %v228, %v247
    %v269 = vmax.f32 %v229, %v249
    %v270 = vmax.f32 %v230, %v251
    %v271 = vmax.f32 %v231, %v253
    %v272 = vmax.f32 %v232, %v255
    %v273 = vmax.f32 %v233, %v257
    %282 = vrot.lane.b32.xlu0 %v266, 96
    %v283 = vpop.permute.xlu0 %282
    %284 = vrot.lane.b32.xlu0 %v267, 96
    %v285 = vpop.permute.xlu0 %284
    %286 = vrot.lane.b32.xlu0 %v268, 96
    %v287 = vpop.permute.xlu0 %286
    %288 = vrot.lane.b32.xlu0 %v269, 96
    %v289 = vpop.permute.xlu0 %288
    %290 = vrot.lane.b32.xlu0 %v270, 96
    %v291 = vpop.permute.xlu0 %290
    %292 = vrot.lane.b32.xlu0 %v271, 96
    %v293 = vpop.permute.xlu0 %292
    %294 = vrot.lane.b32.xlu0 %v272, 96
    %v295 = vpop.permute.xlu0 %294
    %296 = vrot.lane.b32.xlu0 %v273, 96
    %v297 = vpop.permute.xlu0 %296
    %v306 = vmax.f32 %v266, %v283
    %v307 = vmax.f32 %v267, %v285
    %v308 = vmax.f32 %v268, %v287
    %v309 = vmax.f32 %v269, %v289
    %v310 = vmax.f32 %v270, %v291
    %v311 = vmax.f32 %v271, %v293
    %v312 = vmax.f32 %v272, %v295
    %v313 = vmax.f32 %v273, %v297
    %322 = vrot.lane.b32.xlu0 %v306, 112
    %v323 = vpop.permute.xlu0 %322
    %324 = vrot.lane.b32.xlu0 %v307, 112
    %v325 = vpop.permute.xlu0 %324
    %326 = vrot.lane.b32.xlu0 %v308, 112
    %v327 = vpop.permute.xlu0 %326
    %328 = vrot.lane.b32.xlu0 %v309, 112
    %v329 = vpop.permute.xlu0 %328
    %330 = vrot.lane.b32.xlu0 %v310, 112
    %v331 = vpop.permute.xlu0 %330
    %332 = vrot.lane.b32.xlu0 %v311, 112
    %v333 = vpop.permute.xlu0 %332
    %334 = vrot.lane.b32.xlu0 %v312, 112
    %v335 = vpop.permute.xlu0 %334
    %336 = vrot.lane.b32.xlu0 %v313, 112
    %v337 = vpop.permute.xlu0 %336
    %v346 = vmax.f32 %v306, %v323
    %v347 = vmax.f32 %v307, %v325
    %v348 = vmax.f32 %v308, %v327
    %v349 = vmax.f32 %v309, %v329
    %v350 = vmax.f32 %v310, %v331
    %v351 = vmax.f32 %v311, %v333
    %v352 = vmax.f32 %v312, %v335
    %v353 = vmax.f32 %v313, %v337
    %v354 = vld [vmem:[%s3] sm:$0x1]
    %v355 = vlaneseq
    %v356 = vshrl.u32 %v355, 7
    %v357 = vsub.s32 0, %v356
    %v358 = vrot.slane %v354, %v357
    %v359 = vadd.f32 %v346, %v358
    %v360 = vadd.f32 %v347, %v358
    %v361 = vadd.f32 %v348, %v358
    %v362 = vadd.f32 %v349, %v358
    %v363 = vadd.f32 %v350, %v358
    %v364 = vadd.f32 %v351, %v358
    %v365 = vadd.f32 %v352, %v358
    %v366 = vadd.f32 %v353, %v358
    %v367 = vmax.f32 %v359, 0.0
    %v368 = vmax.f32 %v360, 0.0
    %v369 = vmax.f32 %v361, 0.0
    %v370 = vmax.f32 %v362, 0.0
    %v371 = vmax.f32 %v363, 0.0
    %v372 = vmax.f32 %v364, 0.0
    %v373 = vmax.f32 %v365, 0.0
    %v374 = vmax.f32 %v366, 0.0
    %v375 = vld [vmem:[%s4] sm:$0xff]
    %v376 = vld [vmem:[%s4 + $0x8] sm:$0xff]
    %v377 = vld [vmem:[%s4 + $0x10] sm:$0xff]
    %v378 = vld [vmem:[%s4 + $0x18] sm:$0xff]
    %v379 = vld [vmem:[%s4 + $0x20] sm:$0xff]
    %v380 = vld [vmem:[%s4 + $0x28] sm:$0xff]
    %v381 = vld [vmem:[%s4 + $0x30] sm:$0xff]
    %v382 = vld [vmem:[%s4 + $0x38] sm:$0xff]
    %vm383 = vcmask 130048
    %384 = vst.msk [vmem:[#allocation2] sm:$0xff] %vm383, %v367
    %385 = vst.msk [vmem:[#allocation2 + $0x8] sm:$0xff] %vm383, %v368
    %386 = vst.msk [vmem:[#allocation2 + $0x10] sm:$0xff] %vm383, %v369
    %387 = vst.msk [vmem:[#allocation2 + $0x18] sm:$0xff] %vm383, %v370
    %388 = vst.msk [vmem:[#allocation2 + $0x20] sm:$0xff] %vm383, %v371
    %389 = vst.msk [vmem:[#allocation2 + $0x28] sm:$0xff] %vm383, %v372
    %390 = vst.msk [vmem:[#allocation2 + $0x30] sm:$0xff] %vm383, %v373
    %391 = vst.msk [vmem:[#allocation2 + $0x38] sm:$0xff] %vm383, %v374
    %400 = vrot.lane.b32.xlu0 %v375, 16
    %v401 = vpop.permute.xlu0 %400
    %402 = vrot.lane.b32.xlu0 %v376, 16
    %v403 = vpop.permute.xlu0 %402
    %404 = vrot.lane.b32.xlu0 %v377, 16
    %v405 = vpop.permute.xlu0 %404
    %406 = vrot.lane.b32.xlu0 %v378, 16
    %v407 = vpop.permute.xlu0 %406
    %408 = vrot.lane.b32.xlu0 %v379, 16
    %v409 = vpop.permute.xlu0 %408
    %410 = vrot.lane.b32.xlu0 %v380, 16
    %v411 = vpop.permute.xlu0 %410
    %412 = vrot.lane.b32.xlu0 %v381, 16
    %v413 = vpop.permute.xlu0 %412
    %414 = vrot.lane.b32.xlu0 %v382, 16
    %v415 = vpop.permute.xlu0 %414
    %vm424 = vcmask 392320
    %425 = vst.msk [vmem:[#allocation2] sm:$0xff] %vm424, %v401
    %426 = vst.msk [vmem:[#allocation2 + $0x8] sm:$0xff] %vm424, %v403
    %427 = vst.msk [vmem:[#allocation2 + $0x10] sm:$0xff] %vm424, %v405
    %428 = vst.msk [vmem:[#allocation2 + $0x18] sm:$0xff] %vm424, %v407
    %429 = vst.msk [vmem:[#allocation2 + $0x20] sm:$0xff] %vm424, %v409
    %430 = vst.msk [vmem:[#allocation2 + $0x28] sm:$0xff] %vm424, %v411
    %431 = vst.msk [vmem:[#allocation2 + $0x30] sm:$0xff] %vm424, %v413
    %432 = vst.msk [vmem:[#allocation2 + $0x38] sm:$0xff] %vm424, %v415
    %v433 = vld [vmem:[%s2] sm:$0xf]
    %v434 = vld [vmem:[%s2 + $0x4] sm:$0xf]
    %v435 = vld [vmem:[%s2 + $0x8] sm:$0xf]
    %v436 = vld [vmem:[%s2 + $0xc] sm:$0xf]
    %v437 = vld [vmem:[%s2 + $0x10] sm:$0xf]
    %v438 = vld [vmem:[%s2 + $0x14] sm:$0xf]
    %v439 = vld [vmem:[%s2 + $0x18] sm:$0xf]
    %v440 = vld [vmem:[%s2 + $0x1c] sm:$0xf]
    %v441 = vld [vmem:[%s2 + $0x20] sm:$0xf]
    %v442 = vld [vmem:[%s2 + $0x24] sm:$0xf]
    %v443 = vld [vmem:[%s2 + $0x28] sm:$0xf]
    %v444 = vld [vmem:[%s2 + $0x2c] sm:$0xf]
    %v445 = vld [vmem:[%s2 + $0x30] sm:$0xf]
    %v446 = vld [vmem:[%s2 + $0x34] sm:$0xf]
    %v447 = vld [vmem:[#allocation2] sm:$0xff]
    %v448 = vld [vmem:[#allocation2 + $0x8] sm:$0xff]
    %v449 = vld [vmem:[#allocation2 + $0x10] sm:$0xff]
    %v450 = vld [vmem:[#allocation2 + $0x18] sm:$0xff]
    %v451 = vld [vmem:[#allocation2 + $0x20] sm:$0xff]
    %v452 = vld [vmem:[#allocation2 + $0x28] sm:$0xff]
    %v453 = vld [vmem:[#allocation2 + $0x30] sm:$0xff]
    %v454 = vld [vmem:[#allocation2 + $0x38] sm:$0xff]
    %v455 = vpack.c.bf16 %v448, %v447
    %v456 = vpack.c.bf16 %v450, %v449
    %v457 = vpack.c.bf16 %v452, %v451
    %v458 = vpack.c.bf16 %v454, %v453
    %v459 = vld [vmem:[%s3 + $0x1] sm:$0x1]
    %v460 = vlaneseq
    %v461 = vshrl.u32 %v460, 7
    %v462 = vsub.s32 0, %v461
    %v463 = vrot.slane %v459, %v462
    %v470 = vunpack.c.l.b16 %v433
    %v471 = vunpack.c.l.b16 %v434
    %v472 = vunpack.c.l.b16 %v435
    %v473 = vunpack.c.l.b16 %v436
    %v474 = vunpack.c.l.b16 %v437
    %v475 = vunpack.c.l.b16 %v438
    %v476 = vpack.c.b16 %v471, %v470
    %v477 = vpack.c.b16 %v473, %v472
    %v478 = vpack.c.b16 %v475, %v474
    %vm482 = vcmask 392192
    %v484 = vsel %vm482, %v455, 0
    %v487 = vsel %vm482, %v456, 0
    %v490 = vsel %vm482, %v457, 0
    %v493 = vsel %vm482, %v458, 0
    %495 = vmatprep.subr.bf16.mxu0 0
    %496 = vmatpush1.bf16.msra.mxu0 %v476
    %497 = vmatprep.subr.bf16.mxu0 0
    %498 = vmatpush1.bf16.msra.mxu0 %v477
    %499 = vmatprep.subr.bf16.mxu0 0
    %500 = vmatpush1.bf16.msra.mxu0 %v478
    %501 = vmatprep.subr.bf16.mxu0 0
    %502 = vmatpush1.bf16.msra.mxu0 0
    %503 = vmatprep.subr.bf16.mxu0 0
    %504 = vmatpush1.bf16.msra.mxu0 0
    %505 = vmatprep.subr.bf16.mxu0 0
    %506 = vmatpush1.bf16.msra.mxu0 0
    %507 = vmatprep.subr.bf16.mxu0 0
    %508 = vmatpush1.bf16.msra.mxu0 0
    %509 = vmatprep.subr.bf16.mxu0 0
    %510 = vmatpush1.bf16.msra.mxu0 0
    %511 = vmatprep.subr.bf16.mxu0 0
    %512 = vmatpush1.bf16.msra.mxu0 0
    %513 = vmatprep.subr.bf16.mxu0 0
    %514 = vmatpush1.bf16.msra.mxu0 0
    %515 = vmatprep.subr.bf16.mxu0 0
    %516 = vmatpush1.bf16.msra.mxu0 0
    %517 = vmatprep.subr.bf16.mxu0 0
    %518 = vmatpush1.bf16.msra.mxu0 0
    %519 = vmatprep.subr.bf16.mxu0 0
    %520 = vmatpush1.bf16.msra.mxu0 0
    %521 = vmatprep.subr.bf16.mxu0 0
    %522 = vmatpush1.bf16.msra.mxu0 0
    %523 = vmatprep.subr.bf16.mxu0 0
    %524 = vmatpush1.bf16.msra.mxu0 0
    %525 = vmatprep.subr.bf16.mxu0 0
    %526 = vmatpush1.bf16.msra.mxu0 0
    %527 = vmatprep.mubr.bf16.mxu0 0
    %528 = vmatmul.mubr.bf16.gmra.mrb[0].mxu0 %v484
    %v529 = vpop.f32.mrb[0].mxu0
    %v530 = vadd.f32 %v463, %v529
    %v531 = vpop.f32.mrb[0].mxu0
    %v532 = vpop.f32.mrb[0].mxu0
    %v533 = vadd.f32 %v463, %v532
    %v534 = vpop.f32.mrb[0].mxu0
    %535 = vmatprep.mubr.bf16.mxu0 0
    %536 = vmatmul.mubr.bf16.gmra.mrb[0].mxu0 %v487
    %v537 = vpop.f32.mrb[0].mxu0
    %v538 = vadd.f32 %v463, %v537
    %v539 = vpop.f32.mrb[0].mxu0
    %v540 = vpop.f32.mrb[0].mxu0
    %v541 = vadd.f32 %v463, %v540
    %v542 = vpop.f32.mrb[0].mxu0
    %543 = vmatprep.mubr.bf16.mxu0 0
    %544 = vmatmul.mubr.bf16.gmra.mrb[0].mxu0 %v490
    %v545 = vpop.f32.mrb[0].mxu0
    %v546 = vadd.f32 %v463, %v545
    %v547 = vpop.f32.mrb[0].mxu0
    %v548 = vpop.f32.mrb[0].mxu0
    %v549 = vadd.f32 %v463, %v548
    %v550 = vpop.f32.mrb[0].mxu0
    %551 = vmatprep.mubr.bf16.mxu0 0
    %552 = vmatmul.mubr.bf16.gmra.mrb[0].mxu0 %v493
    %v553 = vpop.f32.mrb[0].mxu0
    %v554 = vadd.f32 %v463, %v553
    %v555 = vpop.f32.mrb[0].mxu0
    %v556 = vpop.f32.mrb[0].mxu0
    %v557 = vadd.f32 %v463, %v556
    %v558 = vpop.f32.mrb[0].mxu0
    %559 = vdwg.mxu0
    %v560 = vlaneseq
    %v561 = vand.u32 %v560, 127
    %v562 = vand.u32 %v561, 16
    %vm563 = vcmp.eq.s32.totalorder %v562, 0
    %v564 = vsel %vm563, %v530, %v557
    %v569 = vunpack.c.l.b16 %v439
    %v570 = vunpack.c.l.b16 %v440
    %v571 = vunpack.c.l.b16 %v441
    %v572 = vunpack.c.l.b16 %v442
    %v573 = vpack.c.b16 %v570, %v569
    %v574 = vpack.c.b16 %v572, %v571
    %vm577 = vcmask 261120
    %v579 = vsel %vm577, 0, 0
    %581 = vmatprep.subr.bf16.mxu0 0
    %582 = vmatpush1.bf16.msra.mxu0 %v573
    %583 = vmatprep.subr.bf16.mxu0 0
    %584 = vmatpush1.bf16.msra.mxu0 %v574
    %585 = vmatprep.subr.bf16.mxu0 0
    %586 = vmatpush1.bf16.msra.mxu0 0
    %587 = vmatprep.subr.bf16.mxu0 0
    %588 = vmatpush1.bf16.msra.mxu0 0
    %589 = vmatprep.subr.bf16.mxu0 0
    %590 = vmatpush1.bf16.msra.mxu0 0
    %591 = vmatprep.subr.bf16.mxu0 0
    %592 = vmatpush1.bf16.msra.mxu0 0
    %593 = vmatprep.subr.bf16.mxu0 0
    %594 = vmatpush1.bf16.msra.mxu0 0
    %595 = vmatprep.subr.bf16.mxu0 0
    %596 = vmatpush1.bf16.msra.mxu0 0
    %597 = vmatprep.subr.bf16.mxu0 0
    %598 = vmatpush1.bf16.msra.mxu0 0
    %599 = vmatprep.subr.bf16.mxu0 0
    %600 = vmatpush1.bf16.msra.mxu0 0
    %601 = vmatprep.subr.bf16.mxu0 0
    %602 = vmatpush1.bf16.msra.mxu0 0
    %603 = vmatprep.subr.bf16.mxu0 0
    %604 = vmatpush1.bf16.msra.mxu0 0
    %605 = vmatprep.subr.bf16.mxu0 0
    %606 = vmatpush1.bf16.msra.mxu0 0
    %607 = vmatprep.subr.bf16.mxu0 0
    %608 = vmatpush1.bf16.msra.mxu0 0
    %609 = vmatprep.subr.bf16.mxu0 0
    %610 = vmatpush1.bf16.msra.mxu0 0
    %611 = vmatprep.subr.bf16.mxu0 0
    %612 = vmatpush1.bf16.msra.mxu0 0
    %613 = vmatprep.mubr.bf16.mxu0 0
    %614 = vmatmul.mubr.bf16.gmra.mrb[0].mxu0 %v579
    %v615 = vpop.f32.mrb[0].mxu0
    %v616 = vadd.f32 0.0, %v615
    %v617 = vpop.f32.mrb[0].mxu0
    %v618 = vpop.f32.mrb[0].mxu0
    %v619 = vpop.f32.mrb[0].mxu0
    %620 = vdwg.mxu0
    %v621 = vadd.f32 %v564, %v616
    %v622 = vxor.u32 %v621, 2147483648
    %v623 = vmul.f32 %v622, 1.442695
    %v624 = vpow.pop %v623
    %v625 = vadd.f32 %v624, 1.0
    %v626 = vrcp.pop %v625
    %v627 = vmul.f32 1.0, %v626
    %v628 = vtanh.pop %v621
    %v629 = vmul.f32 %v627, 0.0
    %631 = vrot.lane.b32.xlu0 %v628, 32
    %v632 = vpop.permute.xlu0 %631
    %v634 = vmul.f32 %v627, %v632
    %636 = vrot.lane.b32.xlu0 %v634, 32
    %v637 = vpop.permute.xlu0 %636
    %v639 = vadd.f32 %v629, %v637
    %v640 = vtanh.pop %v639
    %642 = vrot.lane.b32.xlu0 %v640, 32
    %v643 = vpop.permute.xlu0 %642
    %v645 = vmul.f32 %v627, %v643
    %v646 = vmul.f32 %v375, %v639
    %v647 = vadd.f32 %v646, 0.0
    %649 = vrot.lane.b32.xlu0 %v645, 96
    %v650 = vpop.permute.xlu0 %649
    %v652 = vmul.f32 %v375, %v650
    %v653 = vadd.f32 %v652, 0.0
    %655 = vrot.lane.b32.xlu0 %v652, 96
    %v656 = vpop.permute.xlu0 %655
    %658 = vst.msk [vmem:[#allocation3] sm:$0xff] %vm383, %v656
    %vm659 = vcmask 261248
    %660 = vst.msk [vmem:[#allocation3 + $0x38] sm:$0xff] %vm659, %v656
    %v661 = vsel %vm563, %v533, %v554
    %v662 = vpack.c.bf16 %v653, %v653
    %664 = vrot.lane.b32.xlu0 %v662, 96
    %v665 = vpop.permute.xlu0 %664
    %v667 = vsel %vm577, %v665, 0
    %669 = vmatprep.subr.bf16.mxu0 0
    %670 = vmatpush1.bf16.msra.mxu0 %v573
    %671 = vmatprep.subr.bf16.mxu0 0
    %672 = vmatpush1.bf16.msra.mxu0 %v574
    %673 = vmatprep.subr.bf16.mxu0 0
    %674 = vmatpush1.bf16.msra.mxu0 0
    %675 = vmatprep.subr.bf16.mxu0 0
    %676 = vmatpush1.bf16.msra.mxu0 0
    %677 = vmatprep.subr.bf16.mxu0 0
    %678 = vmatpush1.bf16.msra.mxu0 0
    %679 = vmatprep.subr.bf16.mxu0 0
    %680 = vmatpush1.bf16.msra.mxu0 0
    %681 = vmatprep.subr.bf16.mxu0 0
    %682 = vmatpush1.bf16.msra.mxu0 0
    %683 = vmatprep.subr.bf16.mxu0 0
    %684 = vmatpush1.bf16.msra.mxu0 0
    %685 = vmatprep.subr.bf16.mxu0 0
    %686 = vmatpush1.bf16.msra.mxu0 0
    %687 = vmatprep.subr.bf16.mxu0 0
    %688 = vmatpush1.bf16.msra.mxu0 0
    %689 = vmatprep.subr.bf16.mxu0 0
    %690 = vmatpush1.bf16.msra.mxu0 0
    %691 = vmatprep.subr.bf16.mxu0 0
    %692 = vmatpush1.bf16.msra.mxu0 0
    %693 = vmatprep.subr.bf16.mxu0 0
    %694 = vmatpush1.bf16.msra.mxu0 0
    %695 = vmatprep.subr.bf16.mxu0 0
    %696 = vmatpush1.bf16.msra.mxu0 0
    %697 = vmatprep.subr.bf16.mxu0 0
    %698 = vmatpush1.bf16.msra.mxu0 0
    %699 = vmatprep.subr.bf16.mxu0 0
    %700 = vmatpush1.bf16.msra.mxu0 0
    %701 = vmatprep.mubr.bf16.mxu0 0
    %702 = vmatmul.mubr.bf16.gmra.mrb[0].mxu0 %v667
    %v703 = vpop.f32.mrb[0].mxu0
    %v704 = vadd.f32 0.0, %v703
    %v705 = vpop.f32.mrb[0].mxu0
    %v706 = vpop.f32.mrb[0].mxu0
    %v707 = vpop.f32.mrb[0].mxu0
    %708 = vdwg.mxu0
    %v709 = vadd.f32 %v661, %v704
    %v710 = vxor.u32 %v709, 2147483648
    %v711 = vmul.f32 %v710, 1.442695
    %v712 = vpow.pop %v711
    %v713 = vadd.f32 %v712, 1.0
    %v714 = vrcp.pop %v713
    %v715 = vmul.f32 1.0, %v714
    %v716 = vtanh.pop %v709
    %v717 = vmul.f32 %v715, %v647
    %719 = vrot.lane.b32.xlu0 %v716, 32
    %v720 = vpop.permute.xlu0 %719
    %v722 = vmul.f32 %v715, %v720
    %724 = vrot.lane.b32.xlu0 %v722, 32
    %v725 = vpop.permute.xlu0 %724
    %v727 = vadd.f32 %v717, %v725
    %v728 = vtanh.pop %v727
    %730 = vrot.lane.b32.xlu0 %v728, 32
    %v731 = vpop.permute.xlu0 %730
    %v733 = vmul.f32 %v715, %v731
    %v734 = vsub.f32 %v727, %v647
    %v735 = vmul.f32 %v376, %v734
    %v736 = vadd.f32 %v647, %v735
    %738 = vrot.lane.b32.xlu0 %v653, 32
    %v739 = vpop.permute.xlu0 %738
    %v741 = vsub.f32 %v733, %v739
    %743 = vrot.lane.b32.xlu0 %v741, 96
    %v744 = vpop.permute.xlu0 %743
    %v746 = vmul.f32 %v376, %v744
    %v747 = vadd.f32 %v653, %v746
    %749 = vrot.lane.b32.xlu0 %v733, 96
    %v750 = vpop.permute.xlu0 %749
    %v752 = vmul.f32 %v376, %v750
    %754 = vrot.lane.b32.xlu0 %v752, 96
    %v755 = vpop.permute.xlu0 %754
    %757 = vst.msk [vmem:[#allocation3 + $0x8] sm:$0xff] %vm383, %v755
    %758 = vst.msk [vmem:[#allocation3 + $0x30] sm:$0xff] %vm659, %v755
    %v759 = vsel %vm563, %v538, %v549
    %v760 = vpack.c.bf16 %v747, %v747
    %762 = vrot.lane.b32.xlu0 %v760, 96
    %v763 = vpop.permute.xlu0 %762
    %v765 = vsel %vm577, %v763, 0
    %767 = vmatprep.subr.bf16.mxu0 0
    %768 = vmatpush1.bf16.msra.mxu0 %v573
    %769 = vmatprep.subr.bf16.mxu0 0
    %770 = vmatpush1.bf16.msra.mxu0 %v574
    %771 = vmatprep.subr.bf16.mxu0 0
    %772 = vmatpush1.bf16.msra.mxu0 0
    %773 = vmatprep.subr.bf16.mxu0 0
    %774 = vmatpush1.bf16.msra.mxu0 0
    %775 = vmatprep.subr.bf16.mxu0 0
    %776 = vmatpush1.bf16.msra.mxu0 0
    %777 = vmatprep.subr.bf16.mxu0 0
    %778 = vmatpush1.bf16.msra.mxu0 0
    %779 = vmatprep.subr.bf16.mxu0 0
    %780 = vmatpush1.bf16.msra.mxu0 0
    %781 = vmatprep.subr.bf16.mxu0 0
    %782 = vmatpush1.bf16.msra.mxu0 0
    %783 = vmatprep.subr.bf16.mxu0 0
    %784 = vmatpush1.bf16.msra.mxu0 0
    %785 = vmatprep.subr.bf16.mxu0 0
    %786 = vmatpush1.bf16.msra.mxu0 0
    %787 = vmatprep.subr.bf16.mxu0 0
    %788 = vmatpush1.bf16.msra.mxu0 0
    %789 = vmatprep.subr.bf16.mxu0 0
    %790 = vmatpush1.bf16.msra.mxu0 0
    %791 = vmatprep.subr.bf16.mxu0 0
    %792 = vmatpush1.bf16.msra.mxu0 0
    %793 = vmatprep.subr.bf16.mxu0 0
    %794 = vmatpush1.bf16.msra.mxu0 0
    %795 = vmatprep.subr.bf16.mxu0 0
    %796 = vmatpush1.bf16.msra.mxu0 0
    %797 = vmatprep.subr.bf16.mxu0 0
    %798 = vmatpush1.bf16.msra.mxu0 0
    %799 = vmatprep.mubr.bf16.mxu0 0
    %800 = vmatmul.mubr.bf16.gmra.mrb[0].mxu0 %v765
    %v801 = vpop.f32.mrb[0].mxu0
    %v802 = vadd.f32 0.0, %v801
    %v803 = vpop.f32.mrb[0].mxu0
    %v804 = vpop.f32.mrb[0].mxu0
    %v805 = vpop.f32.mrb[0].mxu0
    %806 = vdwg.mxu0
    %v807 = vadd.f32 %v759, %v802
    %v808 = vxor.u32 %v807, 2147483648
    %v809 = vmul.f32 %v808, 1.442695
    %v810 = vpow.pop %v809
    %v811 = vadd.f32 %v810, 1.0
    %v812 = vrcp.pop %v811
    %v813 = vmul.f32 1.0, %v812
    %v814 = vtanh.pop %v807
    %v815 = vmul.f32 %v813, %v736
    %817 = vrot.lane.b32.xlu0 %v814, 32
    %v818 = vpop.permute.xlu0 %817
    %v820 = vmul.f32 %v813, %v818
    %822 = vrot.lane.b32.xlu0 %v820, 32
    %v823 = vpop.permute.xlu0 %822
    %v825 = vadd.f32 %v815, %v823
    %v826 = vtanh.pop %v825
    %828 = vrot.lane.b32.xlu0 %v826, 32
    %v829 = vpop.permute.xlu0 %828
    %v831 = vmul.f32 %v813, %v829
    %v832 = vsub.f32 %v825, %v736
    %v833 = vmul.f32 %v377, %v832
    %v834 = vadd.f32 %v736, %v833
    %836 = vrot.lane.b32.xlu0 %v747, 32
    %v837 = vpop.permute.xlu0 %836
    %v839 = vsub.f32 %v831, %v837
    %841 = vrot.lane.b32.xlu0 %v839, 96
    %v842 = vpop.permute.xlu0 %841
    %v844 = vmul.f32 %v377, %v842
    %v845 = vadd.f32 %v747, %v844
    %847 = vrot.lane.b32.xlu0 %v831, 96
    %v848 = vpop.permute.xlu0 %847
    %v850 = vmul.f32 %v377, %v848
    %852 = vrot.lane.b32.xlu0 %v850, 96
    %v853 = vpop.permute.xlu0 %852
    %855 = vst.msk [vmem:[#allocation3 + $0x10] sm:$0xff] %vm383, %v853
    %856 = vst.msk [vmem:[#allocation3 + $0x28] sm:$0xff] %vm659, %v853
    %v857 = vsel %vm563, %v541, %v546
    %v858 = vpack.c.bf16 %v845, %v845
    %860 = vrot.lane.b32.xlu0 %v858, 96
    %v861 = vpop.permute.xlu0 %860
    %v863 = vsel %vm577, %v861, 0
    %865 = vmatprep.subr.bf16.mxu0 0
    %866 = vmatpush1.bf16.msra.mxu0 %v573
    %867 = vmatprep.subr.bf16.mxu0 0
    %868 = vmatpush1.bf16.msra.mxu0 %v574
    %869 = vmatprep.subr.bf16.mxu0 0
    %870 = vmatpush1.bf16.msra.mxu0 0
    %871 = vmatprep.subr.bf16.mxu0 0
    %872 = vmatpush1.bf16.msra.mxu0 0
    %873 = vmatprep.subr.bf16.mxu0 0
    %874 = vmatpush1.bf16.msra.mxu0 0
    %875 = vmatprep.subr.bf16.mxu0 0
    %876 = vmatpush1.bf16.msra.mxu0 0
    %877 = vmatprep.subr.bf16.mxu0 0
    %878 = vmatpush1.bf16.msra.mxu0 0
    %879 = vmatprep.subr.bf16.mxu0 0
    %880 = vmatpush1.bf16.msra.mxu0 0
    %881 = vmatprep.subr.bf16.mxu0 0
    %882 = vmatpush1.bf16.msra.mxu0 0
    %883 = vmatprep.subr.bf16.mxu0 0
    %884 = vmatpush1.bf16.msra.mxu0 0
    %885 = vmatprep.subr.bf16.mxu0 0
    %886 = vmatpush1.bf16.msra.mxu0 0
    %887 = vmatprep.subr.bf16.mxu0 0
    %888 = vmatpush1.bf16.msra.mxu0 0
    %889 = vmatprep.subr.bf16.mxu0 0
    %890 = vmatpush1.bf16.msra.mxu0 0
    %891 = vmatprep.subr.bf16.mxu0 0
    %892 = vmatpush1.bf16.msra.mxu0 0
    %893 = vmatprep.subr.bf16.mxu0 0
    %894 = vmatpush1.bf16.msra.mxu0 0
    %895 = vmatprep.subr.bf16.mxu0 0
    %896 = vmatpush1.bf16.msra.mxu0 0
    %897 = vmatprep.mubr.bf16.mxu0 0
    %898 = vmatmul.mubr.bf16.gmra.mrb[0].mxu0 %v863
    %v899 = vpop.f32.mrb[0].mxu0
    %v900 = vadd.f32 0.0, %v899
    %v901 = vpop.f32.mrb[0].mxu0
    %v902 = vpop.f32.mrb[0].mxu0
    %v903 = vpop.f32.mrb[0].mxu0
    %904 = vdwg.mxu0
    %v905 = vadd.f32 %v857, %v900
    %v906 = vxor.u32 %v905, 2147483648
    %v907 = vmul.f32 %v906, 1.442695
    %v908 = vpow.pop %v907
    %v909 = vadd.f32 %v908, 1.0
    %v910 = vrcp.pop %v909
    %v911 = vmul.f32 1.0, %v910
    %v912 = vtanh.pop %v905
    %v913 = vmul.f32 %v911, %v834
    %915 = vrot.lane.b32.xlu0 %v912, 32
    %v916 = vpop.permute.xlu0 %915
    %v918 = vmul.f32 %v911, %v916
    %920 = vrot.lane.b32.xlu0 %v918, 32
    %v921 = vpop.permute.xlu0 %920
    %v923 = vadd.f32 %v913, %v921
    %v924 = vtanh.pop %v923
    %926 = vrot.lane.b32.xlu0 %v924, 32
    %v927 = vpop.permute.xlu0 %926
    %v929 = vmul.f32 %v911, %v927
    %v930 = vsub.f32 %v923, %v834
    %v931 = vmul.f32 %v378, %v930
    %v932 = vadd.f32 %v834, %v931
    %934 = vrot.lane.b32.xlu0 %v845, 32
    %v935 = vpop.permute.xlu0 %934
    %v937 = vsub.f32 %v929, %v935
    %939 = vrot.lane.b32.xlu0 %v937, 96
    %v940 = vpop.permute.xlu0 %939
    %v942 = vmul.f32 %v378, %v940
    %v943 = vadd.f32 %v845, %v942
    %945 = vrot.lane.b32.xlu0 %v929, 96
    %v946 = vpop.permute.xlu0 %945
    %v948 = vmul.f32 %v378, %v946
    %950 = vrot.lane.b32.xlu0 %v948, 96
    %v951 = vpop.permute.xlu0 %950
    %953 = vst.msk [vmem:[#allocation3 + $0x18] sm:$0xff] %vm383, %v951
    %954 = vst.msk [vmem:[#allocation3 + $0x20] sm:$0xff] %vm659, %v951
    %v955 = vsel %vm563, %v546, %v541
    %v956 = vpack.c.bf16 %v943, %v943
    %958 = vrot.lane.b32.xlu0 %v956, 96
    %v959 = vpop.permute.xlu0 %958
    %v961 = vsel %vm577, %v959, 0
    %963 = vmatprep.subr.bf16.mxu0 0
    %964 = vmatpush1.bf16.msra.mxu0 %v573
    %965 = vmatprep.subr.bf16.mxu0 0
    %966 = vmatpush1.bf16.msra.mxu0 %v574
    %967 = vmatprep.subr.bf16.mxu0 0
    %968 = vmatpush1.bf16.msra.mxu0 0
    %969 = vmatprep.subr.bf16.mxu0 0
    %970 = vmatpush1.bf16.msra.mxu0 0
    %971 = vmatprep.subr.bf16.mxu0 0
    %972 = vmatpush1.bf16.msra.mxu0 0
    %973 = vmatprep.subr.bf16.mxu0 0
    %974 = vmatpush1.bf16.msra.mxu0 0
    %975 = vmatprep.subr.bf16.mxu0 0
    %976 = vmatpush1.bf16.msra.mxu0 0
    %977 = vmatprep.subr.bf16.mxu0 0
    %978 = vmatpush1.bf16.msra.mxu0 0
    %979 = vmatprep.subr.bf16.mxu0 0
    %980 = vmatpush1.bf16.msra.mxu0 0
    %981 = vmatprep.subr.bf16.mxu0 0
    %982 = vmatpush1.bf16.msra.mxu0 0
    %983 = vmatprep.subr.bf16.mxu0 0
    %984 = vmatpush1.bf16.msra.mxu0 0
    %985 = vmatprep.subr.bf16.mxu0 0
    %986 = vmatpush1.bf16.msra.mxu0 0
    %987 = vmatprep.subr.bf16.mxu0 0
    %988 = vmatpush1.bf16.msra.mxu0 0
    %989 = vmatprep.subr.bf16.mxu0 0
    %990 = vmatpush1.bf16.msra.mxu0 0
    %991 = vmatprep.subr.bf16.mxu0 0
    %992 = vmatpush1.bf16.msra.mxu0 0
    %993 = vmatprep.subr.bf16.mxu0 0
    %994 = vmatpush1.bf16.msra.mxu0 0
    %995 = vmatprep.mubr.bf16.mxu0 0
    %996 = vmatmul.mubr.bf16.gmra.mrb[0].mxu0 %v961
    %v997 = vpop.f32.mrb[0].mxu0
    %v998 = vadd.f32 0.0, %v997
    %v999 = vpop.f32.mrb[0].mxu0
    %v1000 = vpop.f32.mrb[0].mxu0
    %v1001 = vpop.f32.mrb[0].mxu0
    %1002 = vdwg.mxu0
    %v1003 = vadd.f32 %v955, %v998
    %v1004 = vxor.u32 %v1003, 2147483648
    %v1005 = vmul.f32 %v1004, 1.442695
    %v1006 = vpow.pop %v1005
    %v1007 = vadd.f32 %v1006, 1.0
    %v1008 = vrcp.pop %v1007
    %v1009 = vmul.f32 1.0, %v1008
    %v1010 = vtanh.pop %v1003
    %v1011 = vmul.f32 %v1009, %v932
    %1013 = vrot.lane.b32.xlu0 %v1010, 32
    %v1014 = vpop.permute.xlu0 %1013
    %v1016 = vmul.f32 %v1009, %v1014
    %1018 = vrot.lane.b32.xlu0 %v1016, 32
    %v1019 = vpop.permute.xlu0 %1018
    %v1021 = vadd.f32 %v1011, %v1019
    %v1022 = vtanh.pop %v1021
    %1024 = vrot.lane.b32.xlu0 %v1022, 32
    %v1025 = vpop.permute.xlu0 %1024
    %v1027 = vmul.f32 %v1009, %v1025
    %v1028 = vsub.f32 %v1021, %v932
    %v1029 = vmul.f32 %v379, %v1028
    %v1030 = vadd.f32 %v932, %v1029
    %1032 = vrot.lane.b32.xlu0 %v943, 32
    %v1033 = vpop.permute.xlu0 %1032
    %v1035 = vsub.f32 %v1027, %v1033
    %1037 = vrot.lane.b32.xlu0 %v1035, 96
    %v1038 = vpop.permute.xlu0 %1037
    %v1040 = vmul.f32 %v379, %v1038
    %v1041 = vadd.f32 %v943, %v1040
    %1043 = vrot.lane.b32.xlu0 %v1027, 96
    %v1044 = vpop.permute.xlu0 %1043
    %v1046 = vmul.f32 %v379, %v1044
    %1048 = vrot.lane.b32.xlu0 %v1046, 96
    %v1049 = vpop.permute.xlu0 %1048
    %1051 = vst.msk [vmem:[#allocation3 + $0x20] sm:$0xff] %vm383, %v1049
    %1052 = vst.msk [vmem:[#allocation3 + $0x18] sm:$0xff] %vm659, %v1049
    %v1053 = vsel %vm563, %v549, %v538
    %v1054 = vpack.c.bf16 %v1041, %v1041
    %1056 = vrot.lane.b32.xlu0 %v1054, 96
    %v1057 = vpop.permute.xlu0 %1056
    %v1059 = vsel %vm577, %v1057, 0
    %1061 = vmatprep.subr.bf16.mxu0 0
    %1062 = vmatpush1.bf16.msra.mxu0 %v573
    %1063 = vmatprep.subr.bf16.mxu0 0
    %1064 = vmatpush1.bf16.msra.mxu0 %v574
    %1065 = vmatprep.subr.bf16.mxu0 0
    %1066 = vmatpush1.bf16.msra.mxu0 0
    %1067 = vmatprep.subr.bf16.mxu0 0
    %1068 = vmatpush1.bf16.msra.mxu0 0
    %1069 = vmatprep.subr.bf16.mxu0 0
    %1070 = vmatpush1.bf16.msra.mxu0 0
    %1071 = vmatprep.subr.bf16.mxu0 0
    %1072 = vmatpush1.bf16.msra.mxu0 0
    %1073 = vmatprep.subr.bf16.mxu0 0
    %1074 = vmatpush1.bf16.msra.mxu0 0
    %1075 = vmatprep.subr.bf16.mxu0 0
    %1076 = vmatpush1.bf16.msra.mxu0 0
    %1077 = vmatprep.subr.bf16.mxu0 0
    %1078 = vmatpush1.bf16.msra.mxu0 0
    %1079 = vmatprep.subr.bf16.mxu0 0
    %1080 = vmatpush1.bf16.msra.mxu0 0
    %1081 = vmatprep.subr.bf16.mxu0 0
    %1082 = vmatpush1.bf16.msra.mxu0 0
    %1083 = vmatprep.subr.bf16.mxu0 0
    %1084 = vmatpush1.bf16.msra.mxu0 0
    %1085 = vmatprep.subr.bf16.mxu0 0
    %1086 = vmatpush1.bf16.msra.mxu0 0
    %1087 = vmatprep.subr.bf16.mxu0 0
    %1088 = vmatpush1.bf16.msra.mxu0 0
    %1089 = vmatprep.subr.bf16.mxu0 0
    %1090 = vmatpush1.bf16.msra.mxu0 0
    %1091 = vmatprep.subr.bf16.mxu0 0
    %1092 = vmatpush1.bf16.msra.mxu0 0
    %1093 = vmatprep.mubr.bf16.mxu0 0
    %1094 = vmatmul.mubr.bf16.gmra.mrb[0].mxu0 %v1059
    %v1095 = vpop.f32.mrb[0].mxu0
    %v1096 = vadd.f32 0.0, %v1095
    %v1097 = vpop.f32.mrb[0].mxu0
    %v1098 = vpop.f32.mrb[0].mxu0
    %v1099 = vpop.f32.mrb[0].mxu0
    %1100 = vdwg.mxu0
    %v1101 = vadd.f32 %v1053, %v1096
    %v1102 = vxor.u32 %v1101, 2147483648
    %v1103 = vmul.f32 %v1102, 1.442695
    %v1104 = vpow.pop %v1103
    %v1105 = vadd.f32 %v1104, 1.0
    %v1106 = vrcp.pop %v1105
    %v1107 = vmul.f32 1.0, %v1106
    %v1108 = vtanh.pop %v1101
    %v1109 = vmul.f32 %v1107, %v1030
    %1111 = vrot.lane.b32.xlu0 %v1108, 32
    %v1112 = vpop.permute.xlu0 %1111
    %v1114 = vmul.f32 %v1107, %v1112
    %1116 = vrot.lane.b32.xlu0 %v1114, 32
    %v1117 = vpop.permute.xlu0 %1116
    %v1119 = vadd.f32 %v1109, %v1117
    %v1120 = vtanh.pop %v1119
    %1122 = vrot.lane.b32.xlu0 %v1120, 32
    %v1123 = vpop.permute.xlu0 %1122
    %v1125 = vmul.f32 %v1107, %v1123
    %v1126 = vsub.f32 %v1119, %v1030
    %v1127 = vmul.f32 %v380, %v1126
    %v1128 = vadd.f32 %v1030, %v1127
    %1130 = vrot.lane.b32.xlu0 %v1041, 32
    %v1131 = vpop.permute.xlu0 %1130
    %v1133 = vsub.f32 %v1125, %v1131
    %1135 = vrot.lane.b32.xlu0 %v1133, 96
    %v1136 = vpop.permute.xlu0 %1135
    %v1138 = vmul.f32 %v380, %v1136
    %v1139 = vadd.f32 %v1041, %v1138
    %1141 = vrot.lane.b32.xlu0 %v1125, 96
    %v1142 = vpop.permute.xlu0 %1141
    %v1144 = vmul.f32 %v380, %v1142
    %1146 = vrot.lane.b32.xlu0 %v1144, 96
    %v1147 = vpop.permute.xlu0 %1146
    %1149 = vst.msk [vmem:[#allocation3 + $0x28] sm:$0xff] %vm383, %v1147
    %1150 = vst.msk [vmem:[#allocation3 + $0x10] sm:$0xff] %vm659, %v1147
    %v1151 = vsel %vm563, %v554, %v533
    %v1152 = vpack.c.bf16 %v1139, %v1139
    %1154 = vrot.lane.b32.xlu0 %v1152, 96
    %v1155 = vpop.permute.xlu0 %1154
    %v1157 = vsel %vm577, %v1155, 0
    %1159 = vmatprep.subr.bf16.mxu0 0
    %1160 = vmatpush1.bf16.msra.mxu0 %v573
    %1161 = vmatprep.subr.bf16.mxu0 0
    %1162 = vmatpush1.bf16.msra.mxu0 %v574
    %1163 = vmatprep.subr.bf16.mxu0 0
    %1164 = vmatpush1.bf16.msra.mxu0 0
    %1165 = vmatprep.subr.bf16.mxu0 0
    %1166 = vmatpush1.bf16.msra.mxu0 0
    %1167 = vmatprep.subr.bf16.mxu0 0
    %1168 = vmatpush1.bf16.msra.mxu0 0
    %1169 = vmatprep.subr.bf16.mxu0 0
    %1170 = vmatpush1.bf16.msra.mxu0 0
    %1171 = vmatprep.subr.bf16.mxu0 0
    %1172 = vmatpush1.bf16.msra.mxu0 0
    %1173 = vmatprep.subr.bf16.mxu0 0
    %1174 = vmatpush1.bf16.msra.mxu0 0
    %1175 = vmatprep.subr.bf16.mxu0 0
    %1176 = vmatpush1.bf16.msra.mxu0 0
    %1177 = vmatprep.subr.bf16.mxu0 0
    %1178 = vmatpush1.bf16.msra.mxu0 0
    %1179 = vmatprep.subr.bf16.mxu0 0
    %1180 = vmatpush1.bf16.msra.mxu0 0
    %1181 = vmatprep.subr.bf16.mxu0 0
    %1182 = vmatpush1.bf16.msra.mxu0 0
    %1183 = vmatprep.subr.bf16.mxu0 0
    %1184 = vmatpush1.bf16.msra.mxu0 0
    %1185 = vmatprep.subr.bf16.mxu0 0
    %1186 = vmatpush1.bf16.msra.mxu0 0
    %1187 = vmatprep.subr.bf16.mxu0 0
    %1188 = vmatpush1.bf16.msra.mxu0 0
    %1189 = vmatprep.subr.bf16.mxu0 0
    %1190 = vmatpush1.bf16.msra.mxu0 0
    %1191 = vmatprep.mubr.bf16.mxu0 0
    %1192 = vmatmul.mubr.bf16.gmra.mrb[0].mxu0 %v1157
    %v1193 = vpop.f32.mrb[0].mxu0
    %v1194 = vadd.f32 0.0, %v1193
    %v1195 = vpop.f32.mrb[0].mxu0
    %v1196 = vpop.f32.mrb[0].mxu0
    %v1197 = vpop.f32.mrb[0].mxu0
    %1198 = vdwg.mxu0
    %v1199 = vadd.f32 %v1151, %v1194
    %v1200 = vxor.u32 %v1199, 2147483648
    %v1201 = vmul.f32 %v1200, 1.442695
    %v1202 = vpow.pop %v1201
    %v1203 = vadd.f32 %v1202, 1.0
    %v1204 = vrcp.pop %v1203
    %v1205 = vmul.f32 1.0, %v1204
    %v1206 = vtanh.pop %v1199
    %v1207 = vmul.f32 %v1205, %v1128
    %1209 = vrot.lane.b32.xlu0 %v1206, 32
    %v1210 = vpop.permute.xlu0 %1209
    %v1212 = vmul.f32 %v1205, %v1210
    %1214 = vrot.lane.b32.xlu0 %v1212, 32
    %v1215 = vpop.permute.xlu0 %1214
    %v1217 = vadd.f32 %v1207, %v1215
    %v1218 = vtanh.pop %v1217
    %1220 = vrot.lane.b32.xlu0 %v1218, 32
    %v1221 = vpop.permute.xlu0 %1220
    %v1223 = vmul.f32 %v1205, %v1221
    %v1224 = vsub.f32 %v1217, %v1128
    %v1225 = vmul.f32 %v381, %v1224
    %v1226 = vadd.f32 %v1128, %v1225
    %1228 = vrot.lane.b32.xlu0 %v1139, 32
    %v1229 = vpop.permute.xlu0 %1228
    %v1231 = vsub.f32 %v1223, %v1229
    %1233 = vrot.lane.b32.xlu0 %v1231, 96
    %v1234 = vpop.permute.xlu0 %1233
    %v1236 = vmul.f32 %v381, %v1234
    %v1237 = vadd.f32 %v1139, %v1236
    %1239 = vrot.lane.b32.xlu0 %v1223, 96
    %v1240 = vpop.permute.xlu0 %1239
    %v1242 = vmul.f32 %v381, %v1240
    %1244 = vrot.lane.b32.xlu0 %v1242, 96
    %v1245 = vpop.permute.xlu0 %1244
    %1247 = vst.msk [vmem:[#allocation3 + $0x30] sm:$0xff] %vm383, %v1245
    %1248 = vst.msk [vmem:[#allocation3 + $0x8] sm:$0xff] %vm659, %v1245
    %v1249 = vsel %vm563, %v557, %v530
    %v1250 = vpack.c.bf16 %v1237, %v1237
    %1252 = vrot.lane.b32.xlu0 %v1250, 96
    %v1253 = vpop.permute.xlu0 %1252
    %v1255 = vsel %vm577, %v1253, 0
    %1257 = vmatprep.subr.bf16.mxu0 0
    %1258 = vmatpush1.bf16.msra.mxu0 %v573
    %1259 = vmatprep.subr.bf16.mxu0 0
    %1260 = vmatpush1.bf16.msra.mxu0 %v574
    %1261 = vmatprep.subr.bf16.mxu0 0
    %1262 = vmatpush1.bf16.msra.mxu0 0
    %1263 = vmatprep.subr.bf16.mxu0 0
    %1264 = vmatpush1.bf16.msra.mxu0 0
    %1265 = vmatprep.subr.bf16.mxu0 0
    %1266 = vmatpush1.bf16.msra.mxu0 0
    %1267 = vmatprep.subr.bf16.mxu0 0
    %1268 = vmatpush1.bf16.msra.mxu0 0
    %1269 = vmatprep.subr.bf16.mxu0 0
    %1270 = vmatpush1.bf16.msra.mxu0 0
    %1271 = vmatprep.subr.bf16.mxu0 0
    %1272 = vmatpush1.bf16.msra.mxu0 0
    %1273 = vmatprep.subr.bf16.mxu0 0
    %1274 = vmatpush1.bf16.msra.mxu0 0
    %1275 = vmatprep.subr.bf16.mxu0 0
    %1276 = vmatpush1.bf16.msra.mxu0 0
    %1277 = vmatprep.subr.bf16.mxu0 0
    %1278 = vmatpush1.bf16.msra.mxu0 0
    %1279 = vmatprep.subr.bf16.mxu0 0
    %1280 = vmatpush1.bf16.msra.mxu0 0
    %1281 = vmatprep.subr.bf16.mxu0 0
    %1282 = vmatpush1.bf16.msra.mxu0 0
    %1283 = vmatprep.subr.bf16.mxu0 0
    %1284 = vmatpush1.bf16.msra.mxu0 0
    %1285 = vmatprep.subr.bf16.mxu0 0
    %1286 = vmatpush1.bf16.msra.mxu0 0
    %1287 = vmatprep.subr.bf16.mxu0 0
    %1288 = vmatpush1.bf16.msra.mxu0 0
    %1289 = vmatprep.mubr.bf16.mxu0 0
    %1290 = vmatmul.mubr.bf16.gmra.mrb[0].mxu0 %v1255
    %v1291 = vpop.f32.mrb[0].mxu0
    %v1292 = vadd.f32 0.0, %v1291
    %v1293 = vpop.f32.mrb[0].mxu0
    %v1294 = vpop.f32.mrb[0].mxu0
    %v1295 = vpop.f32.mrb[0].mxu0
    %1296 = vdwg.mxu0
    %v1297 = vadd.f32 %v1249, %v1292
    %v1298 = vxor.u32 %v1297, 2147483648
    %v1299 = vmul.f32 %v1298, 1.442695
    %v1300 = vpow.pop %v1299
    %v1301 = vadd.f32 %v1300, 1.0
    %v1302 = vrcp.pop %v1301
    %v1303 = vmul.f32 1.0, %v1302
    %v1304 = vtanh.pop %v1297
    %v1305 = vmul.f32 %v1303, %v1226
    %1307 = vrot.lane.b32.xlu0 %v1304, 32
    %v1308 = vpop.permute.xlu0 %1307
    %v1310 = vmul.f32 %v1303, %v1308
    %1312 = vrot.lane.b32.xlu0 %v1310, 32
    %v1313 = vpop.permute.xlu0 %1312
    %v1315 = vadd.f32 %v1305, %v1313
    %v1316 = vtanh.pop %v1315
    %1318 = vrot.lane.b32.xlu0 %v1316, 32
    %v1319 = vpop.permute.xlu0 %1318
    %v1321 = vmul.f32 %v1303, %v1319
    %1323 = vrot.lane.b32.xlu0 %v1321, 96
    %v1324 = vpop.permute.xlu0 %1323
    %v1326 = vmul.f32 %v382, %v1324
    %1328 = vrot.lane.b32.xlu0 %v1326, 96
    %v1329 = vpop.permute.xlu0 %1328
    %1331 = vst.msk [vmem:[#allocation3 + $0x38] sm:$0xff] %vm383, %v1329
    %1332 = vst.msk [vmem:[#allocation3] sm:$0xff] %vm659, %v1329
    %v1333 = vld [vmem:[#allocation3] sm:$0xff]
    %v1334 = vld [vmem:[#allocation3 + $0x8] sm:$0xff]
    %v1335 = vld [vmem:[#allocation3 + $0x10] sm:$0xff]
    %v1336 = vld [vmem:[#allocation3 + $0x18] sm:$0xff]
    %v1337 = vld [vmem:[#allocation3 + $0x20] sm:$0xff]
    %v1338 = vld [vmem:[#allocation3 + $0x28] sm:$0xff]
    %v1339 = vld [vmem:[#allocation3 + $0x30] sm:$0xff]
    %v1340 = vld [vmem:[#allocation3 + $0x38] sm:$0xff]
    %v1341 = vpack.c.bf16 %v1334, %v1333
    %v1342 = vpack.c.bf16 %v1336, %v1335
    %v1343 = vpack.c.bf16 %v1338, %v1337
    %v1344 = vpack.c.bf16 %v1340, %v1339
    %v1345 = vld [vmem:[%s3 + $0x2] sm:$0x1]
    %v1346 = vlaneseq
    %v1347 = vshrl.u32 %v1346, 7
    %v1348 = vsub.s32 0, %v1347
    %v1349 = vrot.slane %v1345, %v1348
    %v1354 = vunpack.c.l.b16 %v443
    %v1355 = vunpack.c.l.b16 %v444
    %v1356 = vunpack.c.l.b16 %v445
    %v1357 = vunpack.c.l.b16 %v446
    %v1358 = vpack.c.b16 %v1355, %v1354
    %v1359 = vpack.c.b16 %v1357, %v1356
    %v1363 = vsel %vm577, %v1341, 0
    %v1366 = vsel %vm577, %v1342, 0
    %v1369 = vsel %vm577, %v1343, 0
    %v1372 = vsel %vm577, %v1344, 0
    %1374 = vmatprep.subr.bf16.mxu0 0
    %1375 = vmatpush1.bf16.msra.mxu0 %v1358
    %1376 = vmatprep.subr.bf16.mxu0 0
    %1377 = vmatpush1.bf16.msra.mxu0 %v1359
    %1378 = vmatprep.subr.bf16.mxu0 0
    %1379 = vmatpush1.bf16.msra.mxu0 0
    %1380 = vmatprep.subr.bf16.mxu0 0
    %1381 = vmatpush1.bf16.msra.mxu0 0
    %1382 = vmatprep.subr.bf16.mxu0 0
    %1383 = vmatpush1.bf16.msra.mxu0 0
    %1384 = vmatprep.subr.bf16.mxu0 0
    %1385 = vmatpush1.bf16.msra.mxu0 0
    %1386 = vmatprep.subr.bf16.mxu0 0
    %1387 = vmatpush1.bf16.msra.mxu0 0
    %1388 = vmatprep.subr.bf16.mxu0 0
    %1389 = vmatpush1.bf16.msra.mxu0 0
    %1390 = vmatprep.subr.bf16.mxu0 0
    %1391 = vmatpush1.bf16.msra.mxu0 0
    %1392 = vmatprep.subr.bf16.mxu0 0
    %1393 = vmatpush1.bf16.msra.mxu0 0
    %1394 = vmatprep.subr.bf16.mxu0 0
    %1395 = vmatpush1.bf16.msra.mxu0 0
    %1396 = vmatprep.subr.bf16.mxu0 0
    %1397 = vmatpush1.bf16.msra.mxu0 0
    %1398 = vmatprep.subr.bf16.mxu0 0
    %1399 = vmatpush1.bf16.msra.mxu0 0
    %1400 = vmatprep.subr.bf16.mxu0 0
    %1401 = vmatpush1.bf16.msra.mxu0 0
    %1402 = vmatprep.subr.bf16.mxu0 0
    %1403 = vmatpush1.bf16.msra.mxu0 0
    %1404 = vmatprep.subr.bf16.mxu0 0
    %1405 = vmatpush1.bf16.msra.mxu0 0
    %1406 = vmatprep.mubr.bf16.mxu0 0
    %1407 = vmatmul.mubr.bf16.gmra.mrb[0].mxu0 %v1363
    %v1408 = vpop.f32.mrb[0].mxu0
    %v1409 = vadd.f32 %v1349, %v1408
    %v1410 = vpop.f32.mrb[0].mxu0
    %v1411 = vpop.f32.mrb[0].mxu0
    %v1412 = vadd.f32 %v1349, %v1411
    %v1413 = vpop.f32.mrb[0].mxu0
    %1414 = vmatprep.mubr.bf16.mxu0 0
    %1415 = vmatmul.mubr.bf16.gmra.mrb[0].mxu0 %v1366
    %v1416 = vpop.f32.mrb[0].mxu0
    %v1417 = vadd.f32 %v1349, %v1416
    %v1418 = vpop.f32.mrb[0].mxu0
    %v1419 = vpop.f32.mrb[0].mxu0
    %v1420 = vadd.f32 %v1349, %v1419
    %v1421 = vpop.f32.mrb[0].mxu0
    %1422 = vmatprep.mubr.bf16.mxu0 0
    %1423 = vmatmul.mubr.bf16.gmra.mrb[0].mxu0 %v1369
    %v1424 = vpop.f32.mrb[0].mxu0
    %v1425 = vadd.f32 %v1349, %v1424
    %v1426 = vpop.f32.mrb[0].mxu0
    %v1427 = vpop.f32.mrb[0].mxu0
    %v1428 = vadd.f32 %v1349, %v1427
    %v1429 = vpop.f32.mrb[0].mxu0
    %1430 = vmatprep.mubr.bf16.mxu0 0
    %1431 = vmatmul.mubr.bf16.gmra.mrb[0].mxu0 %v1372
    %v1432 = vpop.f32.mrb[0].mxu0
    %v1433 = vadd.f32 %v1349, %v1432
    %v1434 = vpop.f32.mrb[0].mxu0
    %v1435 = vpop.f32.mrb[0].mxu0
    %v1436 = vadd.f32 %v1349, %v1435
    %v1437 = vpop.f32.mrb[0].mxu0
    %1438 = vdwg.mxu0
    %1439 = vmax.xlane.f32.xlu0 %v1409
    %v1440 = vpop.xlane.xlu0 %1439
    %1441 = vmax.xlane.f32.xlu0 %v1412
    %v1442 = vpop.xlane.xlu0 %1441
    %1443 = vmax.xlane.f32.xlu0 %v1417
    %v1444 = vpop.xlane.xlu0 %1443
    %1445 = vmax.xlane.f32.xlu0 %v1420
    %v1446 = vpop.xlane.xlu0 %1445
    %1447 = vmax.xlane.f32.xlu0 %v1425
    %v1448 = vpop.xlane.xlu0 %1447
    %1449 = vmax.xlane.f32.xlu0 %v1428
    %v1450 = vpop.xlane.xlu0 %1449
    %1451 = vmax.xlane.f32.xlu0 %v1433
    %v1452 = vpop.xlane.xlu0 %1451
    %1453 = vmax.xlane.f32.xlu0 %v1436
    %v1454 = vpop.xlane.xlu0 %1453
    %v1455 = vsub.f32 %v1409, %v1440
    %v1456 = vsub.f32 %v1412, %v1442
    %v1457 = vsub.f32 %v1417, %v1444
    %v1458 = vsub.f32 %v1420, %v1446
    %v1459 = vsub.f32 %v1425, %v1448
    %v1460 = vsub.f32 %v1428, %v1450
    %v1461 = vsub.f32 %v1433, %v1452
    %v1462 = vsub.f32 %v1436, %v1454
    %v1463 = vmul.f32 %v1455, 1.442695
    %v1464 = vpow.pop %v1463
    %v1465 = vmul.f32 %v1456, 1.442695
    %v1466 = vpow.pop %v1465
    %v1467 = vmul.f32 %v1457, 1.442695
    %v1468 = vpow.pop %v1467
    %v1469 = vmul.f32 %v1458, 1.442695
    %v1470 = vpow.pop %v1469
    %v1471 = vmul.f32 %v1459, 1.442695
    %v1472 = vpow.pop %v1471
    %v1473 = vmul.f32 %v1460, 1.442695
    %v1474 = vpow.pop %v1473
    %v1475 = vmul.f32 %v1461, 1.442695
    %v1476 = vpow.pop %v1475
    %v1477 = vmul.f32 %v1462, 1.442695
    %v1478 = vpow.pop %v1477
    %1479 = vadd.xlane.f32.xlu0 %v1464
    %v1480 = vpop.xlane.xlu0 %1479
    %1481 = vadd.xlane.f32.xlu0 %v1466
    %v1482 = vpop.xlane.xlu0 %1481
    %1483 = vadd.xlane.f32.xlu0 %v1468
    %v1484 = vpop.xlane.xlu0 %1483
    %1485 = vadd.xlane.f32.xlu0 %v1470
    %v1486 = vpop.xlane.xlu0 %1485
    %1487 = vadd.xlane.f32.xlu0 %v1472
    %v1488 = vpop.xlane.xlu0 %1487
    %1489 = vadd.xlane.f32.xlu0 %v1474
    %v1490 = vpop.xlane.xlu0 %1489
    %1491 = vadd.xlane.f32.xlu0 %v1476
    %v1492 = vpop.xlane.xlu0 %1491
    %1493 = vadd.xlane.f32.xlu0 %v1478
    %v1494 = vpop.xlane.xlu0 %1493
    %v1495 = vlog2.pop %v1480
    %v1496 = vmul.f32 %v1495, 0.6931472
    %v1497 = vlog2.pop %v1482
    %v1498 = vmul.f32 %v1497, 0.6931472
    %v1499 = vlog2.pop %v1484
    %v1500 = vmul.f32 %v1499, 0.6931472
    %v1501 = vlog2.pop %v1486
    %v1502 = vmul.f32 %v1501, 0.6931472
    %v1503 = vlog2.pop %v1488
    %v1504 = vmul.f32 %v1503, 0.6931472
    %v1505 = vlog2.pop %v1490
    %v1506 = vmul.f32 %v1505, 0.6931472
    %v1507 = vlog2.pop %v1492
    %v1508 = vmul.f32 %v1507, 0.6931472
    %v1509 = vlog2.pop %v1494
    %v1510 = vmul.f32 %v1509, 0.6931472
    %v1511 = vadd.f32 %v1440, %v1496
    %v1512 = vadd.f32 %v1442, %v1498
    %v1513 = vadd.f32 %v1444, %v1500
    %v1514 = vadd.f32 %v1446, %v1502
    %v1515 = vadd.f32 %v1448, %v1504
    %v1516 = vadd.f32 %v1450, %v1506
    %v1517 = vadd.f32 %v1452, %v1508
    %v1518 = vadd.f32 %v1454, %v1510
    %v1519 = vld [vmem:[%s5] sm:$0xff]
    %v1520 = vld [vmem:[%s5 + $0x8] sm:$0xff]
    %v1521 = vld [vmem:[%s5 + $0x10] sm:$0xff]
    %v1522 = vld [vmem:[%s5 + $0x18] sm:$0xff]
    %v1523 = vld [vmem:[%s5 + $0x20] sm:$0xff]
    %v1524 = vld [vmem:[%s5 + $0x28] sm:$0xff]
    %v1525 = vld [vmem:[%s5 + $0x30] sm:$0xff]
    %v1526 = vld [vmem:[%s5 + $0x38] sm:$0xff]
    %1527 = vset.pattern.permute.xlu0 0
    %1528 = vperm.xlu0 %1527, %v1519
    %v1529 = vpop.permute.xlu0 %1528
    %1530 = vset.pattern.permute.xlu0 0
    %1531 = vperm.xlu0 %1530, %v1520
    %v1532 = vpop.permute.xlu0 %1531
    %1533 = vset.pattern.permute.xlu0 0
    %1534 = vperm.xlu0 %1533, %v1521
    %v1535 = vpop.permute.xlu0 %1534
    %1536 = vset.pattern.permute.xlu0 0
    %1537 = vperm.xlu0 %1536, %v1522
    %v1538 = vpop.permute.xlu0 %1537
    %1539 = vset.pattern.permute.xlu0 0
    %1540 = vperm.xlu0 %1539, %v1523
    %v1541 = vpop.permute.xlu0 %1540
    %1542 = vset.pattern.permute.xlu0 0
    %1543 = vperm.xlu0 %1542, %v1524
    %v1544 = vpop.permute.xlu0 %1543
    %1545 = vset.pattern.permute.xlu0 0
    %1546 = vperm.xlu0 %1545, %v1525
    %v1547 = vpop.permute.xlu0 %1546
    %1548 = vset.pattern.permute.xlu0 0
    %1549 = vperm.xlu0 %1548, %v1526
    %v1550 = vpop.permute.xlu0 %1549
    %vm1551 = vcmp.eq.s32.totalorder %v561, %v1529
    %vm1552 = vcmp.eq.s32.totalorder %v561, %v1532
    %vm1553 = vcmp.eq.s32.totalorder %v561, %v1535
    %vm1554 = vcmp.eq.s32.totalorder %v561, %v1538
    %vm1555 = vcmp.eq.s32.totalorder %v561, %v1541
    %vm1556 = vcmp.eq.s32.totalorder %v561, %v1544
    %vm1557 = vcmp.eq.s32.totalorder %v561, %v1547
    %vm1558 = vcmp.eq.s32.totalorder %v561, %v1550
    %v1559 = vsel %vm1551, 1, 0
    %v1560 = vsel %vm1552, 1, 0
    %v1561 = vsel %vm1553, 1, 0
    %v1562 = vsel %vm1554, 1, 0
    %v1563 = vsel %vm1555, 1, 0
    %v1564 = vsel %vm1556, 1, 0
    %v1565 = vsel %vm1557, 1, 0
    %v1566 = vsel %vm1558, 1, 0
    %v1567 = vcvt.s32.f32 %v1559
    %v1568 = vcvt.s32.f32 %v1560
    %v1569 = vcvt.s32.f32 %v1561
    %v1570 = vcvt.s32.f32 %v1562
    %v1571 = vcvt.s32.f32 %v1563
    %v1572 = vcvt.s32.f32 %v1564
    %v1573 = vcvt.s32.f32 %v1565
    %v1574 = vcvt.s32.f32 %v1566
    %v1575 = vmul.f32 %v1567, %v1409
    %v1576 = vmul.f32 %v1568, %v1412
    %v1577 = vmul.f32 %v1569, %v1417
    %v1578 = vmul.f32 %v1570, %v1420
    %v1579 = vmul.f32 %v1571, %v1425
    %v1580 = vmul.f32 %v1572, %v1428
    %v1581 = vmul.f32 %v1573, %v1433
    %v1582 = vmul.f32 %v1574, %v1436
    %1583 = vadd.xlane.f32.xlu0 %v1575
    %v1584 = vpop.xlane.xlu0 %1583
    %1585 = vadd.xlane.f32.xlu0 %v1576
    %v1586 = vpop.xlane.xlu0 %1585
    %1587 = vadd.xlane.f32.xlu0 %v1577
    %v1588 = vpop.xlane.xlu0 %1587
    %1589 = vadd.xlane.f32.xlu0 %v1578
    %v1590 = vpop.xlane.xlu0 %1589
    %1591 = vadd.xlane.f32.xlu0 %v1579
    %v1592 = vpop.xlane.xlu0 %1591
    %1593 = vadd.xlane.f32.xlu0 %v1580
    %v1594 = vpop.xlane.xlu0 %1593
    %1595 = vadd.xlane.f32.xlu0 %v1581
    %v1596 = vpop.xlane.xlu0 %1595
    %1597 = vadd.xlane.f32.xlu0 %v1582
    %v1598 = vpop.xlane.xlu0 %1597
    %v1599 = vsub.f32 %v1511, %v1584
    %v1600 = vsub.f32 %v1512, %v1586
    %v1601 = vsub.f32 %v1513, %v1588
    %v1602 = vsub.f32 %v1514, %v1590
    %v1603 = vsub.f32 %v1515, %v1592
    %v1604 = vsub.f32 %v1516, %v1594
    %v1605 = vsub.f32 %v1517, %v1596
    %v1606 = vsub.f32 %v1518, %v1598
    %v1607 = vmul.f32 %v1599, %v375
    %v1608 = vmul.f32 %v1600, %v376
    %v1609 = vmul.f32 %v1601, %v377
    %v1610 = vmul.f32 %v1602, %v378
    %v1611 = vmul.f32 %v1603, %v379
    %v1612 = vmul.f32 %v1604, %v380
    %v1613 = vmul.f32 %v1605, %v381
    %v1614 = vmul.f32 %v1606, %v382
    %1623 = vrot.lane.b32.xlu0 %v1607, 96
    %v1624 = vpop.permute.xlu0 %1623
    %1625 = vrot.lane.b32.xlu0 %v1608, 96
    %v1626 = vpop.permute.xlu0 %1625
    %1627 = vrot.lane.b32.xlu0 %v1609, 96
    %v1628 = vpop.permute.xlu0 %1627
    %1629 = vrot.lane.b32.xlu0 %v1610, 96
    %v1630 = vpop.permute.xlu0 %1629
    %1631 = vrot.lane.b32.xlu0 %v1611, 96
    %v1632 = vpop.permute.xlu0 %1631
    %1633 = vrot.lane.b32.xlu0 %v1612, 96
    %v1634 = vpop.permute.xlu0 %1633
    %1635 = vrot.lane.b32.xlu0 %v1613, 96
    %v1636 = vpop.permute.xlu0 %1635
    %1637 = vrot.lane.b32.xlu0 %v1614, 96
    %v1638 = vpop.permute.xlu0 %1637
    %vm1647 = vcmask 7168
    %v1648 = vsel %vm1647, %v1624, 0.0
    %v1649 = vsel %vm1647, %v1626, 0.0
    %v1650 = vadd.f32 %v1648, %v1649
    %v1651 = vsel %vm1647, %v1628, 0.0
    %v1652 = vadd.f32 %v1650, %v1651
    %v1653 = vsel %vm1647, %v1630, 0.0
    %v1654 = vadd.f32 %v1652, %v1653
    %v1655 = vsel %vm1647, %v1632, 0.0
    %v1656 = vadd.f32 %v1654, %v1655
    %v1657 = vsel %vm1647, %v1634, 0.0
    %v1658 = vadd.f32 %v1656, %v1657
    %v1659 = vsel %vm1647, %v1636, 0.0
    %v1660 = vadd.f32 %v1658, %v1659
    %v1661 = vsel %vm1647, %v1638, 0.0
    %v1662 = vadd.f32 %v1660, %v1661
    %1663 = vadd.xlane.f32.xlu0 %v1662
    %v1664 = vpop.xlane.xlu0 %1663
    %v1665 = vrot.slane %v1664, 4
    %v1666 = vadd.f32 %v1664, %v1665
    %v1667 = vrot.slane %v1666, 2
    %v1668 = vadd.f32 %v1666, %v1667
    %v1669 = vrot.slane %v1668, 1
    %v1670 = vadd.f32 %v1668, %v1669
    %s1671 = vtos %v1670
    %v1672 = vstv %s1671
    %1673 = vrot.lane.b32.xlu0 %v375, 96
    %v1674 = vpop.permute.xlu0 %1673
    %1675 = vrot.lane.b32.xlu0 %v376, 96
    %v1676 = vpop.permute.xlu0 %1675
    %1677 = vrot.lane.b32.xlu0 %v377, 96
    %v1678 = vpop.permute.xlu0 %1677
    %1679 = vrot.lane.b32.xlu0 %v378, 96
    %v1680 = vpop.permute.xlu0 %1679
    %1681 = vrot.lane.b32.xlu0 %v379, 96
    %v1682 = vpop.permute.xlu0 %1681
    %1683 = vrot.lane.b32.xlu0 %v380, 96
    %v1684 = vpop.permute.xlu0 %1683
    %1685 = vrot.lane.b32.xlu0 %v381, 96
    %v1686 = vpop.permute.xlu0 %1685
    %1687 = vrot.lane.b32.xlu0 %v382, 96
    %v1688 = vpop.permute.xlu0 %1687
    %v1697 = vsel %vm1647, %v1674, 0.0
    %v1698 = vsel %vm1647, %v1676, 0.0
    %v1699 = vadd.f32 %v1697, %v1698
    %v1700 = vsel %vm1647, %v1678, 0.0
    %v1701 = vadd.f32 %v1699, %v1700
    %v1702 = vsel %vm1647, %v1680, 0.0
    %v1703 = vadd.f32 %v1701, %v1702
    %v1704 = vsel %vm1647, %v1682, 0.0
    %v1705 = vadd.f32 %v1703, %v1704
    %v1706 = vsel %vm1647, %v1684, 0.0
    %v1707 = vadd.f32 %v1705, %v1706
    %v1708 = vsel %vm1647, %v1686, 0.0
    %v1709 = vadd.f32 %v1707, %v1708
    %v1710 = vsel %vm1647, %v1688, 0.0
    %v1711 = vadd.f32 %v1709, %v1710
    %1712 = vadd.xlane.f32.xlu0 %v1711
    %v1713 = vpop.xlane.xlu0 %1712
    %v1714 = vrot.slane %v1713, 4
    %v1715 = vadd.f32 %v1713, %v1714
    %v1716 = vrot.slane %v1715, 2
    %v1717 = vadd.f32 %v1715, %v1716
    %v1718 = vrot.slane %v1717, 1
    %v1719 = vadd.f32 %v1717, %v1718
    %s1720 = vtos %v1719
    %v1721 = vstv %s1720
    %v1722 = vmax.f32 %v1721, 1.0
    %v1723 = vrcp.pop %v1722
    %v1724 = vmul.f32 %v1672, %v1723
    %vm1725 = vcmask 0
    %1726 = vst.msk [vmem:[#allocation4] sm:$0x1] %vm1725, %v1724
    // Predicated region
    $region26: #{ner_forward.1} parent=1 // pred_check
      _
    $region27: #{ner_forward.1} parent=1 // pred_check_branch
      %1728 = sbr.rel (0) target = $region29
    $region28: #{ner_forward.1} parent=1 // pred_region
      %s1730 = ssub.s32 16, 16
      %1731 = vsyncadd [#allocation5], %s1730
      %s1733 = sshll.u32 [#allocation4], 4
      %s1734 = int_to_ptr.vmem [resolvable:$true] %s1733
      %1736 = dma.vmem_to_hbm [thread:$0]  %s1734, 16, %s6, [#allocation5]
    $region29: #{ner_forward.1} parent=1 // pred_fallthru
      _
    // Predicated region
    $region30: #{ner_forward.1} parent=1 // pred_check
      _
    $region31: #{ner_forward.1} parent=1 // pred_check_branch
      %1738 = sbr.rel (0) target = $region33
    $region32: #{ner_forward.1} parent=1 // pred_region
      %1739 = dma.done [#allocation5], 16
    $region33: #{ner_forward.1} parent=1 // pred_fallthru
      _
    %1740 = vsyncpa [#allocation5], 1

</llo_original>
